<compile_context>
chip_gen: v7x
topology: tpu7x:2x2x1
jax: 0.10.0
libtpu: 0.0.40
codegen_flags: <defaults>
</compile_context>

<pallas_src>
import functools

import jax
import jax.numpy as jnp
from jax.experimental import pallas as pl
from jax.experimental.pallas import tpu as pltpu


# ---------------------------------------------------------------------------
# Fused decoder kernel: all levels for one batch element per grid step.
# Ref order: x_0..x_{L-1}, w_0..w_{L-1}, b_0..b_{L-1}, Gw_1..Gw_{L-1}, out
# ---------------------------------------------------------------------------
def _decoder_kernel(*refs, num_levels, spatial):
    L = num_levels
    x_refs = refs[:L]                      # (1, Cin_i, HWi)  bf16
    w_refs = refs[L:2 * L]                 # (Cout, Cin_i)    bf16
    b_refs = refs[2 * L:3 * L]             # (Cout, 1)        f32
    gw_refs = refs[3 * L:4 * L - 1]        # (W_{i-1}, W_i)   f32 one-hot cols
    o_ref = refs[4 * L - 1]                # (1, Cout, HW_last)

    # Level 0: plain 1x1 conv -> (Cout, HW0), f32 accumulator.
    out = jnp.dot(w_refs[0][...], x_refs[0][0],
                  preferred_element_type=jnp.float32) + b_refs[0][...]

    # Levels 1..L-1: separable nearest upsample (fused) + conv + add.
    for i in range(1, L):
        hp, wp = spatial[i - 1]
        hi, wi = spatial[i]
        gw = gw_refs[i - 1][...]                       # (wp, wi), f32

        # W-axis expansion: one tiny matmul per *source* row (Hp matmuls).
        # H-axis expansion: each expanded row is reused for every destination
        # row that maps to it (exact PyTorch floor: src = (dst * in) // out).
        row_exp = [None] * hp
        pieces = []
        for ho in range(hi):
            src = (ho * hp) // hi                      # static python int
            if row_exp[src] is None:
                row = out[:, src * wp:(src + 1) * wp]  # (Cout, wp), f32
                row_exp[src] = jnp.dot(row, gw,
                                       preferred_element_type=jnp.float32)
            pieces.append(row_exp[src])
        up = jnp.concatenate(pieces, axis=1)           # (Cout, hi*wi), f32

        proj = jnp.dot(w_refs[i][...], x_refs[i][0],
                       preferred_element_type=jnp.float32)
        out = proj + b_refs[i][...] + up

    o_ref[0] = out.astype(o_ref.dtype)


# ---------------------------------------------------------------------------
# Nearest-neighbour upsample along W as a tiny (W_in, W_out) one-hot matrix.
# Matches F.interpolate(mode='nearest') floor indexing: src = (dst * in) // out
# (identical to PyTorch for integer ratios; may differ by one source pixel for
#  exotic non-integer ratios due to PyTorch's float scale).
# ---------------------------------------------------------------------------
def make_w_upsample_matrix(w_in, w_out, dtype=jnp.float32):
    src = (jnp.arange(w_out) * w_in) // w_out
    return (jnp.arange(w_in)[:, None] == src[None, :]).astype(dtype)


# ---------------------------------------------------------------------------
# Wrapper: layout plumbing + dtype casts only (NCHW reshapes are free views).
# ---------------------------------------------------------------------------
def decoder_forward(xs_nchw, params, *, compute_dtype=jnp.bfloat16):
    """xs_nchw: list of NCHW arrays (deepest/coarsest first). Returns NCHW."""
    L = len(xs_nchw)
    n = xs_nchw[0].shape[0]
    cout = params[0]["w"].shape[0]
    out_dtype = xs_nchw[0].dtype
    spatial = tuple((int(x.shape[2]), int(x.shape[3])) for x in xs_nchw)
    hw = [h * w for h, w in spatial]

    # bf16 for the MXU-facing operands (halves x's HBM->VMEM bytes, native MXU
    # path on v5e/v6e/v7x); bias / running activations / upsample stay f32.
    xs_flat = [x.reshape(x.shape[0], x.shape[1], -1).astype(compute_dtype)
               for x in xs_nchw]                                     # (N,Cin,HW)
    ws = [p["w"].astype(compute_dtype) for p in params]              # (Cout,Cin)
    bs = [p["b"].reshape(cout, 1).astype(jnp.float32) for p in params]
    gws = [make_w_upsample_matrix(spatial[i - 1][1], spatial[i][1])
           for i in range(1, L)]                                     # (Wp, Wi)

    in_specs = []
    for x in xs_flat:     # per-batch block, full Cin x full HW (lane-dense)
        in_specs.append(pl.BlockSpec((1,) + x.shape[1:], lambda b: (b, 0, 0)))
    for w in ws:          # constant index_map -> loaded once, VMEM-resident
        in_specs.append(pl.BlockSpec(w.shape, lambda b: (0, 0)))
    for b_ in bs:
        in_specs.append(pl.BlockSpec(b_.shape, lambda b: (0, 0)))
    for g in gws:
        in_specs.append(pl.BlockSpec(g.shape, lambda b: (0, 0)))

    out_specs = pl.BlockSpec((1, cout, hw[-1]), lambda b: (b, 0, 0))

    # Per-generation VMEM limit: ~75% of physical capacity (48 MiB on v7x,
    # 96 MiB on v5e/v6e) instead of hard-coding v7x's full 64 MiB.
    try:
        vmem_cap = int(pltpu.get_tpu_info().vmem_capacity_bytes)
    except Exception:  # pragma: no cover - conservative fallback
        vmem_cap = 64 * 1024 * 1024
    vmem_limit = int(vmem_cap * 3 // 4)

    out = pl.pallas_call(
        functools.partial(_decoder_kernel, num_levels=L, spatial=spatial),
        out_shape=jax.ShapeDtypeStruct((n, cout, hw[-1]), out_dtype),
        grid_spec=pltpu.PrefetchScalarGridSpec(
            num_scalar_prefetch=0,
            grid=(n,),
            in_specs=in_specs,
            out_specs=out_specs,
        ),
        compiler_params=pltpu.CompilerParams(
            dimension_semantics=("parallel",),   # batch axis independent
            vmem_limit_bytes=vmem_limit,
        ),
    )(*xs_flat, *ws, *bs, *gws)

    h_last, w_last = spatial[-1]
    return out.reshape(n, cout, h_last, w_last)


# ---------------------------------------------------------------------------
# Pure-jnp reference with the same numerics (bf16-rounded inputs/weights,
# f32 accumulation) so the comparison isolates kernel correctness.
# ---------------------------------------------------------------------------
def _nearest_resize_nchw(x, out_h, out_w):
    in_h, in_w = x.shape[2], x.shape[3]
    hi = (jnp.arange(out_h) * in_h) // out_h
    wi = (jnp.arange(out_w) * in_w) // out_w
    return x[:, :, hi][:, :, :, wi]


def decoder_reference(xs_nchw, params, *, compute_dtype=jnp.bfloat16):
    hp = jax.lax.Precision.HIGHEST

    def cast(a):
        return a.astype(compute_dtype).astype(jnp.float32)

    out = jnp.einsum("oc,nchw->nohw", cast(params[0]["w"]), cast(xs_nchw[0]),
                     precision=hp)
    out = out + params[0]["b"][None, :, None, None]
    for i in range(1, len(xs_nchw)):
        cur = xs_nchw[i]
        up = _nearest_resize_nchw(out, cur.shape[2], cur.shape[3])
        proj = jnp.einsum("oc,nchw->nohw", cast(params[i]["w"]), cast(cur),
                          precision=hp)
        out = proj + params[i]["b"][None, :, None, None] + up
    return out


# ---------------------------------------------------------------------------
# Deterministic parameter init (mirrors nn.Conv2d(cin, cout, 1); weights stored
# as (Cout, Cin) == torch weight[:, :, 0, 0]).
# ---------------------------------------------------------------------------
def init_params(key, channels_in, channels_out):
    params = []
    for cin in channels_in:
        key, kw, kb = jax.random.split(key, 3)
        scale = 1.0 / jnp.sqrt(cin)
        params.append({
            "w": (jax.random.uniform(kw, (channels_out, cin),
                                     minval=-1.0, maxval=1.0) * scale
                  ).astype(jnp.float32),
            "b": (jax.random.uniform(kb, (channels_out,),
                                     minval=-1.0, maxval=1.0) * scale
                  ).astype(jnp.float32),
        })
    return params


if __name__ == "__main__":
    key = jax.random.PRNGKey(0)

    channels_in = [4, 8, 16]      # deepest -> shallowest feature maps
    channels_out = 32             # NOTE: production Cout (128/256) fills the
    channels_out = 32             # MXU; toy channels are deliberately small.
    batch = 2
    spatials = [4, 8, 16]         # H == W per level (2x between levels)

    k_param, k_data = jax.random.split(key)
    params = init_params(k_param, channels_in, channels_out)

    xs = []
    for cin, s in zip(channels_in, spatials):
        k_data, kx = jax.random.split(k_data)
        xs.append(jax.random.normal(kx, (batch, cin, s, s), dtype=jnp.float32))

    out = decoder_forward(xs, params)
    out = jax.block_until_ready(out)

    ref = decoder_reference(xs, params)
    assert out.shape == (batch, channels_out, spatials[-1], spatials[-1]), out.shape
    assert jnp.allclose(out, ref, atol=1e-4, rtol=1e-4), (
        "mismatch vs reference: max abs diff = %f"
        % float(jnp.max(jnp.abs(out - ref))))

    print("KERNEL_OK")
</pallas_src>

<mosaic_0001>
module attributes {stable_mosaic.version = 11 : i64} {
  func.func @_decoder_kernel(%arg0: i32, %arg1: memref<1x4x16xbf16, #tpu.memory_space<vmem>>, %arg2: memref<1x8x64xbf16, #tpu.memory_space<vmem>>, %arg3: memref<1x16x256xbf16, #tpu.memory_space<vmem>>, %arg4: memref<32x4xbf16, #tpu.memory_space<vmem>>, %arg5: memref<32x8xbf16, #tpu.memory_space<vmem>>, %arg6: memref<32x16xbf16, #tpu.memory_space<vmem>>, %arg7: memref<32x1xf32, #tpu.memory_space<vmem>>, %arg8: memref<32x1xf32, #tpu.memory_space<vmem>>, %arg9: memref<32x1xf32, #tpu.memory_space<vmem>>, %arg10: memref<4x8xf32, #tpu.memory_space<vmem>>, %arg11: memref<8x16xf32, #tpu.memory_space<vmem>>, %arg12: memref<1x32x256xf32, #tpu.memory_space<vmem>>) attributes {dimension_semantics = [#tpu.dimension_semantics<parallel>], iteration_bounds = array<i64: 2>, scalar_prefetch = 0 : i64, scratch_operands = 0 : i64, tpu.core_type = #tpu.core_type<tc>, window_params = [{transform_indices = @transform_0, window_bounds = array<i64: 1, 4, 16>}, {transform_indices = @transform_1, window_bounds = array<i64: 1, 8, 64>}, {transform_indices = @transform_2, window_bounds = array<i64: 1, 16, 256>}, {pipeline_mode = #tpu.pipeline_mode<synchronous>, transform_indices = @transform_3, window_bounds = array<i64: 32, 4>}, {pipeline_mode = #tpu.pipeline_mode<synchronous>, transform_indices = @transform_4, window_bounds = array<i64: 32, 8>}, {pipeline_mode = #tpu.pipeline_mode<synchronous>, transform_indices = @transform_5, window_bounds = array<i64: 32, 16>}, {pipeline_mode = #tpu.pipeline_mode<synchronous>, transform_indices = @transform_6, window_bounds = array<i64: 32, 1>}, {pipeline_mode = #tpu.pipeline_mode<synchronous>, transform_indices = @transform_7, window_bounds = array<i64: 32, 1>}, {pipeline_mode = #tpu.pipeline_mode<synchronous>, transform_indices = @transform_8, window_bounds = array<i64: 32, 1>}, {pipeline_mode = #tpu.pipeline_mode<synchronous>, transform_indices = @transform_9, window_bounds = array<i64: 4, 8>}, {pipeline_mode = #tpu.pipeline_mode<synchronous>, transform_indices = @transform_10, window_bounds = array<i64: 8, 16>}, {transform_indices = @transform_11, window_bounds = array<i64: 1, 32, 256>}]} {
    %c0 = arith.constant 0 : index
    %c0_0 = arith.constant 0 : index
    %0 = vector.load %arg4[%c0, %c0_0] : memref<32x4xbf16, #tpu.memory_space<vmem>>, vector<32x4xbf16>
    %c0_1 = arith.constant 0 : index
    %c0_2 = arith.constant 0 : index
    %c0_3 = arith.constant 0 : index
    %1 = vector.load %arg1[%c0_1, %c0_2, %c0_3] : memref<1x4x16xbf16, #tpu.memory_space<vmem>>, vector<1x4x16xbf16>
    %2 = vector.shape_cast %1 : vector<1x4x16xbf16> to vector<4x16xbf16>
    %cst = arith.constant dense<0.000000e+00> : vector<32x16xf32>
    %3 = tpu.matmul %0, %2, %cst {dimension_numbers = #tpu.dot_dimension_numbers<[1], [0], [0], [1], [0, 0, 1, 1], [], []>} : vector<32x4xbf16>, vector<4x16xbf16>, vector<32x16xf32> -> vector<32x16xf32>
    %c0_4 = arith.constant 0 : index
    %c0_5 = arith.constant 0 : index
    %4 = vector.load %arg7[%c0_4, %c0_5] : memref<32x1xf32, #tpu.memory_space<vmem>>, vector<32x1xf32>
    %5 = vector.broadcast %4 : vector<32x1xf32> to vector<32x16xf32>
    %6 = arith.addf %3, %5 : vector<32x16xf32>
    %c0_6 = arith.constant 0 : index
    %c0_7 = arith.constant 0 : index
    %7 = vector.load %arg10[%c0_6, %c0_7] : memref<4x8xf32, #tpu.memory_space<vmem>>, vector<4x8xf32>
    %8 = vector.extract_strided_slice %6 {offsets = [0, 0], sizes = [32, 4], strides = [1, 1]} : vector<32x16xf32> to vector<32x4xf32>
    %cst_8 = arith.constant dense<0.000000e+00> : vector<32x8xf32>
    %9 = tpu.matmul %8, %7, %cst_8 {dimension_numbers = #tpu.dot_dimension_numbers<[1], [0], [0], [1], [0, 0, 1, 1], [], []>} : vector<32x4xf32>, vector<4x8xf32>, vector<32x8xf32> -> vector<32x8xf32>
    %10 = vector.extract_strided_slice %6 {offsets = [0, 4], sizes = [32, 4], strides = [1, 1]} : vector<32x16xf32> to vector<32x4xf32>
    %cst_9 = arith.constant dense<0.000000e+00> : vector<32x8xf32>
    %11 = tpu.matmul %10, %7, %cst_9 {dimension_numbers = #tpu.dot_dimension_numbers<[1], [0], [0], [1], [0, 0, 1, 1], [], []>} : vector<32x4xf32>, vector<4x8xf32>, vector<32x8xf32> -> vector<32x8xf32>
    %12 = vector.extract_strided_slice %6 {offsets = [0, 8], sizes = [32, 4], strides = [1, 1]} : vector<32x16xf32> to vector<32x4xf32>
    %cst_10 = arith.constant dense<0.000000e+00> : vector<32x8xf32>
    %13 = tpu.matmul %12, %7, %cst_10 {dimension_numbers = #tpu.dot_dimension_numbers<[1], [0], [0], [1], [0, 0, 1, 1], [], []>} : vector<32x4xf32>, vector<4x8xf32>, vector<32x8xf32> -> vector<32x8xf32>
    %14 = vector.extract_strided_slice %6 {offsets = [0, 12], sizes = [32, 4], strides = [1, 1]} : vector<32x16xf32> to vector<32x4xf32>
    %cst_11 = arith.constant dense<0.000000e+00> : vector<32x8xf32>
    %15 = tpu.matmul %14, %7, %cst_11 {dimension_numbers = #tpu.dot_dimension_numbers<[1], [0], [0], [1], [0, 0, 1, 1], [], []>} : vector<32x4xf32>, vector<4x8xf32>, vector<32x8xf32> -> vector<32x8xf32>
    %16 = tpu.concatenate %9, %9, %11, %11, %13, %13, %15, %15 in 1 : vector<32x8xf32>, vector<32x8xf32>, vector<32x8xf32>, vector<32x8xf32>, vector<32x8xf32>, vector<32x8xf32>, vector<32x8xf32>, vector<32x8xf32> -> vector<32x64xf32>
    %c0_12 = arith.constant 0 : index
    %c0_13 = arith.constant 0 : index
    %17 = vector.load %arg5[%c0_12, %c0_13] : memref<32x8xbf16, #tpu.memory_space<vmem>>, vector<32x8xbf16>
    %c0_14 = arith.constant 0 : index
    %c0_15 = arith.constant 0 : index
    %c0_16 = arith.constant 0 : index
    %18 = vector.load %arg2[%c0_14, %c0_15, %c0_16] : memref<1x8x64xbf16, #tpu.memory_space<vmem>>, vector<1x8x64xbf16>
    %19 = vector.shape_cast %18 : vector<1x8x64xbf16> to vector<8x64xbf16>
    %cst_17 = arith.constant dense<0.000000e+00> : vector<32x64xf32>
    %20 = tpu.matmul %17, %19, %cst_17 {dimension_numbers = #tpu.dot_dimension_numbers<[1], [0], [0], [1], [0, 0, 1, 1], [], []>} : vector<32x8xbf16>, vector<8x64xbf16>, vector<32x64xf32> -> vector<32x64xf32>
    %c0_18 = arith.constant 0 : index
    %c0_19 = arith.constant 0 : index
    %21 = vector.load %arg8[%c0_18, %c0_19] : memref<32x1xf32, #tpu.memory_space<vmem>>, vector<32x1xf32>
    %22 = vector.broadcast %21 : vector<32x1xf32> to vector<32x64xf32>
    %23 = arith.addf %20, %22 : vector<32x64xf32>
    %24 = arith.addf %23, %16 : vector<32x64xf32>
    %c0_20 = arith.constant 0 : index
    %c0_21 = arith.constant 0 : index
    %25 = vector.load %arg11[%c0_20, %c0_21] : memref<8x16xf32, #tpu.memory_space<vmem>>, vector<8x16xf32>
    %26 = vector.extract_strided_slice %24 {offsets = [0, 0], sizes = [32, 8], strides = [1, 1]} : vector<32x64xf32> to vector<32x8xf32>
    %cst_22 = arith.constant dense<0.000000e+00> : vector<32x16xf32>
    %27 = tpu.matmul %26, %25, %cst_22 {dimension_numbers = #tpu.dot_dimension_numbers<[1], [0], [0], [1], [0, 0, 1, 1], [], []>} : vector<32x8xf32>, vector<8x16xf32>, vector<32x16xf32> -> vector<32x16xf32>
    %28 = vector.extract_strided_slice %24 {offsets = [0, 8], sizes = [32, 8], strides = [1, 1]} : vector<32x64xf32> to vector<32x8xf32>
    %cst_23 = arith.constant dense<0.000000e+00> : vector<32x16xf32>
    %29 = tpu.matmul %28, %25, %cst_23 {dimension_numbers = #tpu.dot_dimension_numbers<[1], [0], [0], [1], [0, 0, 1, 1], [], []>} : vector<32x8xf32>, vector<8x16xf32>, vector<32x16xf32> -> vector<32x16xf32>
    %30 = vector.extract_strided_slice %24 {offsets = [0, 16], sizes = [32, 8], strides = [1, 1]} : vector<32x64xf32> to vector<32x8xf32>
    %cst_24 = arith.constant dense<0.000000e+00> : vector<32x16xf32>
    %31 = tpu.matmul %30, %25, %cst_24 {dimension_numbers = #tpu.dot_dimension_numbers<[1], [0], [0], [1], [0, 0, 1, 1], [], []>} : vector<32x8xf32>, vector<8x16xf32>, vector<32x16xf32> -> vector<32x16xf32>
    %32 = vector.extract_strided_slice %24 {offsets = [0, 24], sizes = [32, 8], strides = [1, 1]} : vector<32x64xf32> to vector<32x8xf32>
    %cst_25 = arith.constant dense<0.000000e+00> : vector<32x16xf32>
    %33 = tpu.matmul %32, %25, %cst_25 {dimension_numbers = #tpu.dot_dimension_numbers<[1], [0], [0], [1], [0, 0, 1, 1], [], []>} : vector<32x8xf32>, vector<8x16xf32>, vector<32x16xf32> -> vector<32x16xf32>
    %34 = vector.extract_strided_slice %24 {offsets = [0, 32], sizes = [32, 8], strides = [1, 1]} : vector<32x64xf32> to vector<32x8xf32>
    %cst_26 = arith.constant dense<0.000000e+00> : vector<32x16xf32>
    %35 = tpu.matmul %34, %25, %cst_26 {dimension_numbers = #tpu.dot_dimension_numbers<[1], [0], [0], [1], [0, 0, 1, 1], [], []>} : vector<32x8xf32>, vector<8x16xf32>, vector<32x16xf32> -> vector<32x16xf32>
    %36 = vector.extract_strided_slice %24 {offsets = [0, 40], sizes = [32, 8], strides = [1, 1]} : vector<32x64xf32> to vector<32x8xf32>
    %cst_27 = arith.constant dense<0.000000e+00> : vector<32x16xf32>
    %37 = tpu.matmul %36, %25, %cst_27 {dimension_numbers = #tpu.dot_dimension_numbers<[1], [0], [0], [1], [0, 0, 1, 1], [], []>} : vector<32x8xf32>, vector<8x16xf32>, vector<32x16xf32> -> vector<32x16xf32>
    %38 = vector.extract_strided_slice %24 {offsets = [0, 48], sizes = [32, 8], strides = [1, 1]} : vector<32x64xf32> to vector<32x8xf32>
    %cst_28 = arith.constant dense<0.000000e+00> : vector<32x16xf32>
    %39 = tpu.matmul %38, %25, %cst_28 {dimension_numbers = #tpu.dot_dimension_numbers<[1], [0], [0], [1], [0, 0, 1, 1], [], []>} : vector<32x8xf32>, vector<8x16xf32>, vector<32x16xf32> -> vector<32x16xf32>
    %40 = vector.extract_strided_slice %24 {offsets = [0, 56], sizes = [32, 8], strides = [1, 1]} : vector<32x64xf32> to vector<32x8xf32>
    %cst_29 = arith.constant dense<0.000000e+00> : vector<32x16xf32>
    %41 = tpu.matmul %40, %25, %cst_29 {dimension_numbers = #tpu.dot_dimension_numbers<[1], [0], [0], [1], [0, 0, 1, 1], [], []>} : vector<32x8xf32>, vector<8x16xf32>, vector<32x16xf32> -> vector<32x16xf32>
    %42 = tpu.concatenate %27, %27, %29, %29, %31, %31, %33, %33, %35, %35, %37, %37, %39, %39, %41, %41 in 1 : vector<32x16xf32>, vector<32x16xf32>, vector<32x16xf32>, vector<32x16xf32>, vector<32x16xf32>, vector<32x16xf32>, vector<32x16xf32>, vector<32x16xf32>, vector<32x16xf32>, vector<32x16xf32>, vector<32x16xf32>, vector<32x16xf32>, vector<32x16xf32>, vector<32x16xf32>, vector<32x16xf32>, vector<32x16xf32> -> vector<32x256xf32>
    %c0_30 = arith.constant 0 : index
    %c0_31 = arith.constant 0 : index
    %43 = vector.load %arg6[%c0_30, %c0_31] : memref<32x16xbf16, #tpu.memory_space<vmem>>, vector<32x16xbf16>
    %c0_32 = arith.constant 0 : index
    %c0_33 = arith.constant 0 : index
    %c0_34 = arith.constant 0 : index
    %44 = vector.load %arg3[%c0_32, %c0_33, %c0_34] : memref<1x16x256xbf16, #tpu.memory_space<vmem>>, vector<1x16x256xbf16>
    %45 = vector.shape_cast %44 : vector<1x16x256xbf16> to vector<16x256xbf16>
    %cst_35 = arith.constant dense<0.000000e+00> : vector<32x256xf32>
    %46 = tpu.matmul %43, %45, %cst_35 {dimension_numbers = #tpu.dot_dimension_numbers<[1], [0], [0], [1], [0, 0, 1, 1], [], []>} : vector<32x16xbf16>, vector<16x256xbf16>, vector<32x256xf32> -> vector<32x256xf32>
    %c0_36 = arith.constant 0 : index
    %c0_37 = arith.constant 0 : index
    %47 = vector.load %arg9[%c0_36, %c0_37] : memref<32x1xf32, #tpu.memory_space<vmem>>, vector<32x1xf32>
    %48 = vector.broadcast %47 : vector<32x1xf32> to vector<32x256xf32>
    %49 = arith.addf %46, %48 : vector<32x256xf32>
    %50 = arith.addf %49, %42 : vector<32x256xf32>
    %c0_38 = arith.constant 0 : index
    %c0_39 = arith.constant 0 : index
    %c0_40 = arith.constant 0 : index
    %51 = vector.load %arg12[%c0_38, %c0_39, %c0_40] : memref<1x32x256xf32, #tpu.memory_space<vmem>>, vector<1x32x256xf32>
    %52 = vector.shape_cast %51 : vector<1x32x256xf32> to vector<32x256xf32>
    %53 = vector.shape_cast %50 : vector<32x256xf32> to vector<1x32x256xf32>
    tpu.vector_store %arg12[%c0_38, %c0_39, %c0_40], %53 {strides = array<i32>} : memref<1x32x256xf32, #tpu.memory_space<vmem>>, vector<1x32x256xf32>,
    return
  }
  func.func @transform_0(%arg0: i32) -> (i32, i32, i32) {
    %c0_i32 = arith.constant 0 : i32
    %c0_i32_0 = arith.constant 0 : i32
    %c0_i32_1 = arith.constant 0 : i32
    return %arg0, %c0_i32, %c0_i32_0 : i32, i32, i32
  }
  func.func @transform_1(%arg0: i32) -> (i32, i32, i32) {
    %c0_i32 = arith.constant 0 : i32
    %c0_i32_0 = arith.constant 0 : i32
    %c0_i32_1 = arith.constant 0 : i32
    return %arg0, %c0_i32, %c0_i32_0 : i32, i32, i32
  }
  func.func @transform_2(%arg0: i32) -> (i32, i32, i32) {
    %c0_i32 = arith.constant 0 : i32
    %c0_i32_0 = arith.constant 0 : i32
    %c0_i32_1 = arith.constant 0 : i32
    return %arg0, %c0_i32, %c0_i32_0 : i32, i32, i32
  }
  func.func @transform_3(%arg0: i32) -> (i32, i32) {
    %c0_i32 = arith.constant 0 : i32
    %c0_i32_0 = arith.constant 0 : i32
    %c0_i32_1 = arith.constant 0 : i32
    return %c0_i32, %c0_i32_0 : i32, i32
  }
  func.func @transform_4(%arg0: i32) -> (i32, i32) {
    %c0_i32 = arith.constant 0 : i32
    %c0_i32_0 = arith.constant 0 : i32
    %c0_i32_1 = arith.constant 0 : i32
    return %c0_i32, %c0_i32_0 : i32, i32
  }
  func.func @transform_5(%arg0: i32) -> (i32, i32) {
    %c0_i32 = arith.constant 0 : i32
    %c0_i32_0 = arith.constant 0 : i32
    %c0_i32_1 = arith.constant 0 : i32
    return %c0_i32, %c0_i32_0 : i32, i32
  }
  func.func @transform_6(%arg0: i32) -> (i32, i32) {
    %c0_i32 = arith.constant 0 : i32
    %c0_i32_0 = arith.constant 0 : i32
    %c0_i32_1 = arith.constant 0 : i32
    return %c0_i32, %c0_i32_0 : i32, i32
  }
  func.func @transform_7(%arg0: i32) -> (i32, i32) {
    %c0_i32 = arith.constant 0 : i32
    %c0_i32_0 = arith.constant 0 : i32
    %c0_i32_1 = arith.constant 0 : i32
    return %c0_i32, %c0_i32_0 : i32, i32
  }
  func.func @transform_8(%arg0: i32) -> (i32, i32) {
    %c0_i32 = arith.constant 0 : i32
    %c0_i32_0 = arith.constant 0 : i32
    %c0_i32_1 = arith.constant 0 : i32
    return %c0_i32, %c0_i32_0 : i32, i32
  }
  func.func @transform_9(%arg0: i32) -> (i32, i32) {
    %c0_i32 = arith.constant 0 : i32
    %c0_i32_0 = arith.constant 0 : i32
    %c0_i32_1 = arith.constant 0 : i32
    return %c0_i32, %c0_i32_0 : i32, i32
  }
  func.func @transform_10(%arg0: i32) -> (i32, i32) {
    %c0_i32 = arith.constant 0 : i32
    %c0_i32_0 = arith.constant 0 : i32
    %c0_i32_1 = arith.constant 0 : i32
    return %c0_i32, %c0_i32_0 : i32, i32
  }
  func.func @transform_11(%arg0: i32) -> (i32, i32, i32) {
    %c0_i32 = arith.constant 0 : i32
    %c0_i32_0 = arith.constant 0 : i32
    %c0_i32_1 = arith.constant 0 : i32
    return %arg0, %c0_i32, %c0_i32_0 : i32, i32, i32
  }
}

</mosaic_0001>

<llo_original>
// kernel: tpu_custom_call.1
$region0: #{tpu_custom_call.1}
  #allocation0 [shape = 'u32[]', space=smem, size = 0x4, offset = 0x4, fixed_abs, tag = 'smem constant byte address 0x4 - core index']
  #allocation1 [shape = 'u32[144,128]{1,0:T(1,128)}', space=vmem, size = 0x12000, scoped, tag = 'internal scratch']
  %s0 = inlined_call_operand.vmem [shape: bf16[2,4,16], index: 0, kind: input, shape index: {}]
  %s1 = inlined_call_operand.vmem [shape: bf16[2,8,64], index: 1, kind: input, shape index: {}]
  %s2 = inlined_call_operand.vmem [shape: bf16[2,16,256], index: 2, kind: input, shape index: {}]
  %s3 = inlined_call_operand.vmem [shape: bf16[32,4], index: 3, kind: input, shape index: {}]
  %s4 = inlined_call_operand.vmem [shape: bf16[32,8], index: 4, kind: input, shape index: {}]
  %s5 = inlined_call_operand.vmem [shape: bf16[32,16], index: 5, kind: input, shape index: {}]
  %s6 = inlined_call_operand.vmem [shape: f32[32,1], index: 6, kind: input, shape index: {}]
  %s7 = inlined_call_operand.vmem [shape: f32[32,1], index: 7, kind: input, shape index: {}]
  %s8 = inlined_call_operand.vmem [shape: f32[32,1], index: 8, kind: input, shape index: {}]
  %s9 = inlined_call_operand.vmem [shape: f32[4,8], index: 9, kind: input, shape index: {}]
  %s10 = inlined_call_operand.vmem [shape: f32[8,16], index: 10, kind: input, shape index: {}]
  %s11 = inlined_call_operand.hbm [shape: f32[2,32,256], index: 11, kind: output, shape index: {}]
  %s12 = sld [smem:[#allocation0]]
  $region77: #{tpu_custom_call.1} parent=0
    _
  %s14 = ssub.s32 1, %s12
  %s15 = scalar_select 0, %s14, %s12
  $region1: #{tpu_custom_call.1} parent=0
    #allocation2 [shape = 'u8[65536]{0}', space=vmem, size = 0x10000, scoped, tag = 'output window, operand 0']
    #allocation3 [shape = 's32[2]{0}', space=sflag, size = 0x8, scoped, tag = 'scoped memory for tpu_custom_call.1']
    %16 = vsyncpa [#allocation3], 0
    %s17 = scalar_lea.sflag [#allocation3], 1
    %18 = vsyncpa %s17, 0
    loop: start=0, step=1, limit=4
    $region2: #{tpu_custom_call.1} parent=1 // loop_pre_header
      _
    $region3: #{tpu_custom_call.1} parent=1 // loop_header
      %s20 = sphi 0, %s24
      %p21 = scmp.ge.s32.totalorder %s20, 4
      %s30 = sphi 0, %s32
      %s33 = sphi 0, %s30
      %s34 = sphi 0, %s33
      %s50 = sphi 0, %s34
      %s56 = sphi 0, %s58
      %s59 = sphi 0, %s56
      %s60 = sphi 0, %s59
      %s76 = sphi 0, %s60
      %s82 = sphi 0, %s84
      %s85 = sphi 0, %s82
      %s86 = sphi 0, %s85
      %s102 = sphi 0, %s86
      %s106 = sphi 0, %s106
      %s108 = sphi 0, %s106
      %s109 = sphi 0, %s108
      %s123 = sphi 0, %s109
      %s127 = sphi 0, %s127
      %s129 = sphi 0, %s127
      %s130 = sphi 0, %s129
      %s144 = sphi 0, %s130
      %s148 = sphi 0, %s148
      %s150 = sphi 0, %s148
      %s151 = sphi 0, %s150
      %s165 = sphi 0, %s151
      %s169 = sphi 0, %s169
      %s171 = sphi 0, %s169
      %s172 = sphi 0, %s171
      %s186 = sphi 0, %s172
      %s190 = sphi 0, %s190
      %s192 = sphi 0, %s190
      %s193 = sphi 0, %s192
      %s207 = sphi 0, %s193
      %s211 = sphi 0, %s211
      %s213 = sphi 0, %s211
      %s214 = sphi 0, %s213
      %s228 = sphi 0, %s214
      %s232 = sphi 0, %s232
      %s234 = sphi 0, %s232
      %s235 = sphi 0, %s234
      %s249 = sphi 0, %s235
      %s253 = sphi 0, %s253
      %s255 = sphi 0, %s253
      %s256 = sphi 0, %s255
      %s270 = sphi 0, %s256
      %s276 = sphi 0, %s278
      %s279 = sphi 0, %s276
      %s280 = sphi 0, %s279
      %s296 = sphi 0, %s280
    $region4: #{tpu_custom_call.1} parent=1 // loop_header_branch
      %23 = sbr.rel (%p21) target = $region8
    $region5: #{tpu_custom_call.1} parent=1 // loop_body
      %s25 = ssub.s32 %s20, 1
      %s26 = ssub.s32 %s20, 2
      %s27 = sadd.s32 %s20, 1
      %s28 = ssub.s32 %s20, %s27
      %p29 = scmp.eq.s32.totalorder %s28, 0
      %s31 = sadd.s32 %s30, 1
      %s32 = scalar_select %p29, %s30, %s31
      %p35 = pneg %p29
      %p36 = scmp.eq.s32.totalorder %s20, 1
      %p37 = por %p35, %p36
      %p38 = scmp.ne.s32.totalorder %s30, %s33
      %p39 = scmp.eq.s32.totalorder %s20, 0
      %p40 = por %p38, %p39
      %p41 = scmp.ne.s32.totalorder %s30, %s33
      %p42 = scmp.eq.s32.totalorder %s25, 1
      %p43 = por %p41, %p42
      %p44 = scmp.ne.s32.totalorder %s33, %s34
      %p45 = scmp.eq.s32.totalorder %s25, 0
      %p46 = por %p44, %p45
      %p47 = scmp.ne.s32.totalorder %s33, %s34
      %p48 = scmp.eq.s32.totalorder %s26, 1
      %p49 = por %p47, %p48
      %p51 = scmp.ne.s32.totalorder %s34, %s50
      %p52 = scmp.eq.s32.totalorder %s26, 0
      %p53 = por %p51, %p52
      %s54 = ssub.s32 %s20, %s27
      %p55 = scmp.eq.s32.totalorder %s54, 0
      %s57 = sadd.s32 %s56, 1
      %s58 = scalar_select %p55, %s56, %s57
      %p61 = pneg %p55
      %p62 = scmp.eq.s32.totalorder %s20, 1
      %p63 = por %p61, %p62
      %p64 = scmp.ne.s32.totalorder %s56, %s59
      %p65 = scmp.eq.s32.totalorder %s20, 0
      %p66 = por %p64, %p65
      %p67 = scmp.ne.s32.totalorder %s56, %s59
      %p68 = scmp.eq.s32.totalorder %s25, 1
      %p69 = por %p67, %p68
      %p70 = scmp.ne.s32.totalorder %s59, %s60
      %p71 = scmp.eq.s32.totalorder %s25, 0
      %p72 = por %p70, %p71
      %p73 = scmp.ne.s32.totalorder %s59, %s60
      %p74 = scmp.eq.s32.totalorder %s26, 1
      %p75 = por %p73, %p74
      %p77 = scmp.ne.s32.totalorder %s60, %s76
      %p78 = scmp.eq.s32.totalorder %s26, 0
      %p79 = por %p77, %p78
      %s80 = ssub.s32 %s20, %s27
      %p81 = scmp.eq.s32.totalorder %s80, 0
      %s83 = sadd.s32 %s82, 1
      %s84 = scalar_select %p81, %s82, %s83
      %p87 = pneg %p81
      %p88 = scmp.eq.s32.totalorder %s20, 1
      %p89 = por %p87, %p88
      %p90 = scmp.ne.s32.totalorder %s82, %s85
      %p91 = scmp.eq.s32.totalorder %s20, 0
      %p92 = por %p90, %p91
      %p93 = scmp.ne.s32.totalorder %s82, %s85
      %p94 = scmp.eq.s32.totalorder %s25, 1
      %p95 = por %p93, %p94
      %p96 = scmp.ne.s32.totalorder %s85, %s86
      %p97 = scmp.eq.s32.totalorder %s25, 0
      %p98 = por %p96, %p97
      %p99 = scmp.ne.s32.totalorder %s85, %s86
      %p100 = scmp.eq.s32.totalorder %s26, 1
      %p101 = por %p99, %p100
      %p103 = scmp.ne.s32.totalorder %s86, %s102
      %p104 = scmp.eq.s32.totalorder %s26, 0
      %p105 = por %p103, %p104
      %s107 = sadd.s32 %s106, 1
      %p110 = scmp.eq.s32.totalorder %s20, 1
      %p111 = scmp.ne.s32.totalorder %s106, %s108
      %p112 = scmp.eq.s32.totalorder %s20, 0
      %p113 = por %p111, %p112
      %p114 = scmp.ne.s32.totalorder %s106, %s108
      %p115 = scmp.eq.s32.totalorder %s25, 1
      %p116 = por %p114, %p115
      %p117 = scmp.ne.s32.totalorder %s108, %s109
      %p118 = scmp.eq.s32.totalorder %s25, 0
      %p119 = por %p117, %p118
      %p120 = scmp.ne.s32.totalorder %s108, %s109
      %p121 = scmp.eq.s32.totalorder %s26, 1
      %p122 = por %p120, %p121
      %p124 = scmp.ne.s32.totalorder %s109, %s123
      %p125 = scmp.eq.s32.totalorder %s26, 0
      %p126 = por %p124, %p125
      %s128 = sadd.s32 %s127, 1
      %p131 = scmp.eq.s32.totalorder %s20, 1
      %p132 = scmp.ne.s32.totalorder %s127, %s129
      %p133 = scmp.eq.s32.totalorder %s20, 0
      %p134 = por %p132, %p133
      %p135 = scmp.ne.s32.totalorder %s127, %s129
      %p136 = scmp.eq.s32.totalorder %s25, 1
      %p137 = por %p135, %p136
      %p138 = scmp.ne.s32.totalorder %s129, %s130
      %p139 = scmp.eq.s32.totalorder %s25, 0
      %p140 = por %p138, %p139
      %p141 = scmp.ne.s32.totalorder %s129, %s130
      %p142 = scmp.eq.s32.totalorder %s26, 1
      %p143 = por %p141, %p142
      %p145 = scmp.ne.s32.totalorder %s130, %s144
      %p146 = scmp.eq.s32.totalorder %s26, 0
      %p147 = por %p145, %p146
      %s149 = sadd.s32 %s148, 1
      %p152 = scmp.eq.s32.totalorder %s20, 1
      %p153 = scmp.ne.s32.totalorder %s148, %s150
      %p154 = scmp.eq.s32.totalorder %s20, 0
      %p155 = por %p153, %p154
      %p156 = scmp.ne.s32.totalorder %s148, %s150
      %p157 = scmp.eq.s32.totalorder %s25, 1
      %p158 = por %p156, %p157
      %p159 = scmp.ne.s32.totalorder %s150, %s151
      %p160 = scmp.eq.s32.totalorder %s25, 0
      %p161 = por %p159, %p160
      %p162 = scmp.ne.s32.totalorder %s150, %s151
      %p163 = scmp.eq.s32.totalorder %s26, 1
      %p164 = por %p162, %p163
      %p166 = scmp.ne.s32.totalorder %s151, %s165
      %p167 = scmp.eq.s32.totalorder %s26, 0
      %p168 = por %p166, %p167
      %s170 = sadd.s32 %s169, 1
      %p173 = scmp.eq.s32.totalorder %s20, 1
      %p174 = scmp.ne.s32.totalorder %s169, %s171
      %p175 = scmp.eq.s32.totalorder %s20, 0
      %p176 = por %p174, %p175
      %p177 = scmp.ne.s32.totalorder %s169, %s171
      %p178 = scmp.eq.s32.totalorder %s25, 1
      %p179 = por %p177, %p178
      %p180 = scmp.ne.s32.totalorder %s171, %s172
      %p181 = scmp.eq.s32.totalorder %s25, 0
      %p182 = por %p180, %p181
      %p183 = scmp.ne.s32.totalorder %s171, %s172
      %p184 = scmp.eq.s32.totalorder %s26, 1
      %p185 = por %p183, %p184
      %p187 = scmp.ne.s32.totalorder %s172, %s186
      %p188 = scmp.eq.s32.totalorder %s26, 0
      %p189 = por %p187, %p188
      %s191 = sadd.s32 %s190, 1
      %p194 = scmp.eq.s32.totalorder %s20, 1
      %p195 = scmp.ne.s32.totalorder %s190, %s192
      %p196 = scmp.eq.s32.totalorder %s20, 0
      %p197 = por %p195, %p196
      %p198 = scmp.ne.s32.totalorder %s190, %s192
      %p199 = scmp.eq.s32.totalorder %s25, 1
      %p200 = por %p198, %p199
      %p201 = scmp.ne.s32.totalorder %s192, %s193
      %p202 = scmp.eq.s32.totalorder %s25, 0
      %p203 = por %p201, %p202
      %p204 = scmp.ne.s32.totalorder %s192, %s193
      %p205 = scmp.eq.s32.totalorder %s26, 1
      %p206 = por %p204, %p205
      %p208 = scmp.ne.s32.totalorder %s193, %s207
      %p209 = scmp.eq.s32.totalorder %s26, 0
      %p210 = por %p208, %p209
      %s212 = sadd.s32 %s211, 1
      %p215 = scmp.eq.s32.totalorder %s20, 1
      %p216 = scmp.ne.s32.totalorder %s211, %s213
      %p217 = scmp.eq.s32.totalorder %s20, 0
      %p218 = por %p216, %p217
      %p219 = scmp.ne.s32.totalorder %s211, %s213
      %p220 = scmp.eq.s32.totalorder %s25, 1
      %p221 = por %p219, %p220
      %p222 = scmp.ne.s32.totalorder %s213, %s214
      %p223 = scmp.eq.s32.totalorder %s25, 0
      %p224 = por %p222, %p223
      %p225 = scmp.ne.s32.totalorder %s213, %s214
      %p226 = scmp.eq.s32.totalorder %s26, 1
      %p227 = por %p225, %p226
      %p229 = scmp.ne.s32.totalorder %s214, %s228
      %p230 = scmp.eq.s32.totalorder %s26, 0
      %p231 = por %p229, %p230
      %s233 = sadd.s32 %s232, 1
      %p236 = scmp.eq.s32.totalorder %s20, 1
      %p237 = scmp.ne.s32.totalorder %s232, %s234
      %p238 = scmp.eq.s32.totalorder %s20, 0
      %p239 = por %p237, %p238
      %p240 = scmp.ne.s32.totalorder %s232, %s234
      %p241 = scmp.eq.s32.totalorder %s25, 1
      %p242 = por %p240, %p241
      %p243 = scmp.ne.s32.totalorder %s234, %s235
      %p244 = scmp.eq.s32.totalorder %s25, 0
      %p245 = por %p243, %p244
      %p246 = scmp.ne.s32.totalorder %s234, %s235
      %p247 = scmp.eq.s32.totalorder %s26, 1
      %p248 = por %p246, %p247
      %p250 = scmp.ne.s32.totalorder %s235, %s249
      %p251 = scmp.eq.s32.totalorder %s26, 0
      %p252 = por %p250, %p251
      %s254 = sadd.s32 %s253, 1
      %p257 = scmp.eq.s32.totalorder %s20, 1
      %p258 = scmp.ne.s32.totalorder %s253, %s255
      %p259 = scmp.eq.s32.totalorder %s20, 0
      %p260 = por %p258, %p259
      %p261 = scmp.ne.s32.totalorder %s253, %s255
      %p262 = scmp.eq.s32.totalorder %s25, 1
      %p263 = por %p261, %p262
      %p264 = scmp.ne.s32.totalorder %s255, %s256
      %p265 = scmp.eq.s32.totalorder %s25, 0
      %p266 = por %p264, %p265
      %p267 = scmp.ne.s32.totalorder %s255, %s256
      %p268 = scmp.eq.s32.totalorder %s26, 1
      %p269 = por %p267, %p268
      %p271 = scmp.ne.s32.totalorder %s256, %s270
      %p272 = scmp.eq.s32.totalorder %s26, 0
      %p273 = por %p271, %p272
      %s274 = ssub.s32 %s20, %s27
      %p275 = scmp.eq.s32.totalorder %s274, 0
      %s277 = sadd.s32 %s276, 1
      %s278 = scalar_select %p275, %s276, %s277
      %p281 = pneg %p275
      %p282 = scmp.eq.s32.totalorder %s20, 1
      %p283 = por %p281, %p282
      %p284 = scmp.ne.s32.totalorder %s276, %s279
      %p285 = scmp.eq.s32.totalorder %s20, 0
      %p286 = por %p284, %p285
      %p287 = scmp.ne.s32.totalorder %s276, %s279
      %p288 = scmp.eq.s32.totalorder %s25, 1
      %p289 = por %p287, %p288
      %p290 = scmp.ne.s32.totalorder %s279, %s280
      %p291 = scmp.eq.s32.totalorder %s25, 0
      %p292 = por %p290, %p291
      %p293 = scmp.ne.s32.totalorder %s279, %s280
      %p294 = scmp.eq.s32.totalorder %s26, 1
      %p295 = por %p293, %p294
      %p297 = scmp.ne.s32.totalorder %s280, %s296
      %p298 = scmp.eq.s32.totalorder %s26, 0
      %p299 = por %p297, %p298
      %p300 = scmp.le.s32.totalorder 1, %s20
      %p301 = scmp.lt.s32.totalorder %s20, 3
      %p302 = pnand %p300, %p301
      %p303 = pneg %p302
      // Predicated region
      $region9: #{tpu_custom_call.1} parent=5 // pred_check
        _
      $region10: #{tpu_custom_call.1} parent=5 // pred_check_branch
        %305 = sbr.rel (%p302) target = $region12
      $region11: #{tpu_custom_call.1} parent=5 // pred_region
        %s306 = ssub.s32 %s20, 1
        // Predicated region
        $region13: #{tpu_custom_call.1} parent=11 // pred_check
          %p307 = pneg %p119
        $region14: #{tpu_custom_call.1} parent=11 // pred_check_branch
          %309 = sbr.rel (%p307) target = $region16
        $region15: #{tpu_custom_call.1} parent=11 // pred_region
          _
        $region16: #{tpu_custom_call.1} parent=11 // pred_fallthru
          _
        // Predicated region
        $region17: #{tpu_custom_call.1} parent=11 // pred_check
          %p310 = pneg %p140
        $region18: #{tpu_custom_call.1} parent=11 // pred_check_branch
          %312 = sbr.rel (%p310) target = $region20
        $region19: #{tpu_custom_call.1} parent=11 // pred_region
          _
        $region20: #{tpu_custom_call.1} parent=11 // pred_fallthru
          _
        // Predicated region
        $region21: #{tpu_custom_call.1} parent=11 // pred_check
          %p313 = pneg %p161
        $region22: #{tpu_custom_call.1} parent=11 // pred_check_branch
          %315 = sbr.rel (%p313) target = $region24
        $region23: #{tpu_custom_call.1} parent=11 // pred_region
          _
        $region24: #{tpu_custom_call.1} parent=11 // pred_fallthru
          _
        // Predicated region
        $region25: #{tpu_custom_call.1} parent=11 // pred_check
          %p316 = pneg %p182
        $region26: #{tpu_custom_call.1} parent=11 // pred_check_branch
          %318 = sbr.rel (%p316) target = $region28
        $region27: #{tpu_custom_call.1} parent=11 // pred_region
          _
        $region28: #{tpu_custom_call.1} parent=11 // pred_fallthru
          _
        // Predicated region
        $region29: #{tpu_custom_call.1} parent=11 // pred_check
          %p319 = pneg %p203
        $region30: #{tpu_custom_call.1} parent=11 // pred_check_branch
          %321 = sbr.rel (%p319) target = $region32
        $region31: #{tpu_custom_call.1} parent=11 // pred_region
          _
        $region32: #{tpu_custom_call.1} parent=11 // pred_fallthru
          _
        // Predicated region
        $region33: #{tpu_custom_call.1} parent=11 // pred_check
          %p322 = pneg %p224
        $region34: #{tpu_custom_call.1} parent=11 // pred_check_branch
          %324 = sbr.rel (%p322) target = $region36
        $region35: #{tpu_custom_call.1} parent=11 // pred_region
          _
        $region36: #{tpu_custom_call.1} parent=11 // pred_fallthru
          _
        // Predicated region
        $region37: #{tpu_custom_call.1} parent=11 // pred_check
          %p325 = pneg %p245
        $region38: #{tpu_custom_call.1} parent=11 // pred_check_branch
          %327 = sbr.rel (%p325) target = $region40
        $region39: #{tpu_custom_call.1} parent=11 // pred_region
          _
        $region40: #{tpu_custom_call.1} parent=11 // pred_fallthru
          _
        // Predicated region
        $region41: #{tpu_custom_call.1} parent=11 // pred_check
          %p328 = pneg %p266
        $region42: #{tpu_custom_call.1} parent=11 // pred_check_branch
          %330 = sbr.rel (%p328) target = $region44
        $region43: #{tpu_custom_call.1} parent=11 // pred_region
          _
        $region44: #{tpu_custom_call.1} parent=11 // pred_fallthru
          _
      $region12: #{tpu_custom_call.1} parent=5 // pred_fallthru
        _
      %p331 = scmp.lt.s32.totalorder %s20, 2
      // Predicated region
      $region45: #{tpu_custom_call.1} parent=5 // pred_check
        %p332 = pneg %p331
      $region46: #{tpu_custom_call.1} parent=5 // pred_check_branch
        %334 = sbr.rel (%p332) target = $region48
      $region47: #{tpu_custom_call.1} parent=5 // pred_region
        // Predicated region
        $region49: #{tpu_custom_call.1} parent=47 // pred_check
          %p335 = pneg %p40
        $region50: #{tpu_custom_call.1} parent=47 // pred_check_branch
          %337 = sbr.rel (%p335) target = $region52
        $region51: #{tpu_custom_call.1} parent=47 // pred_region
          %p338 = scmp.lt.s32.totalorder %s20, 1
          %s339 = scalar_select %p338, %s20, 1
          %s340 = smul.addr %s339, 2
          %s341 = scalar_lea.vmem %s0, %s340
        $region52: #{tpu_custom_call.1} parent=47 // pred_fallthru
          _
        // Predicated region
        $region53: #{tpu_custom_call.1} parent=47 // pred_check
          %p342 = pneg %p66
        $region54: #{tpu_custom_call.1} parent=47 // pred_check_branch
          %344 = sbr.rel (%p342) target = $region56
        $region55: #{tpu_custom_call.1} parent=47 // pred_region
          %p345 = scmp.lt.s32.totalorder %s20, 1
          %s346 = scalar_select %p345, %s20, 1
          %s347 = smul.addr %s346, 4
          %s348 = scalar_lea.vmem %s1, %s347
        $region56: #{tpu_custom_call.1} parent=47 // pred_fallthru
          _
        // Predicated region
        $region57: #{tpu_custom_call.1} parent=47 // pred_check
          %p349 = pneg %p92
        $region58: #{tpu_custom_call.1} parent=47 // pred_check_branch
          %351 = sbr.rel (%p349) target = $region60
        $region59: #{tpu_custom_call.1} parent=47 // pred_region
          %p352 = scmp.lt.s32.totalorder %s20, 1
          %s353 = scalar_select %p352, %s20, 1
          %s354 = smul.addr %s353, 4
          %s355 = smul.addr %s354, 4
          %s356 = scalar_lea.vmem %s2, %s355
        $region60: #{tpu_custom_call.1} parent=47 // pred_fallthru
          _
      $region48: #{tpu_custom_call.1} parent=5 // pred_fallthru
        _
      %p357 = scmp.le.s32.totalorder 1, %s20
      %p358 = scmp.lt.s32.totalorder %s20, 3
      %p359 = pnand %p357, %p358
      %p360 = pneg %p359
      // Predicated region
      $region61: #{tpu_custom_call.1} parent=5 // pred_check
        _
      $region62: #{tpu_custom_call.1} parent=5 // pred_check_branch
        %362 = sbr.rel (%p359) target = $region64
      $region63: #{tpu_custom_call.1} parent=5 // pred_region
        %s363 = ssub.s32 %s20, 1
        %p364 = scmp.lt.s32.totalorder %s25, 1
        %s365 = scalar_select %p364, %s25, 1
        %s366 = smul.addr %s365, 2
        %s367 = scalar_lea.vmem %s0, %s366
        %p368 = pneg %p46
        %p369 = pneg %p43
        %p370 = scmp.lt.s32.totalorder %s25, 1
        %s371 = scalar_select %p370, %s25, 1
        %s372 = smul.addr %s371, 4
        %s373 = scalar_lea.vmem %s1, %s372
        %p374 = pneg %p72
        %p375 = pneg %p69
        %p376 = scmp.lt.s32.totalorder %s25, 1
        %s377 = scalar_select %p376, %s25, 1
        %s378 = smul.addr %s377, 4
        %s379 = smul.addr %s378, 4
        %s380 = scalar_lea.vmem %s2, %s379
        %p381 = pneg %p98
        %p382 = pneg %p95
        %p383 = pneg %p119
        %p384 = pneg %p116
        %p385 = pneg %p140
        %p386 = pneg %p137
        %p387 = pneg %p161
        %p388 = pneg %p158
        %p389 = pneg %p182
        %p390 = pneg %p179
        %p391 = pneg %p203
        %p392 = pneg %p200
        %p393 = pneg %p224
        %p394 = pneg %p221
        %p395 = pneg %p245
        %p396 = pneg %p242
        %p397 = pneg %p266
        %p398 = pneg %p263
        %p399 = pneg %p292
        %p400 = pneg %p289
        %s401 = sand.u32 %s279, 1
        %s402 = scalar_lea.sflag [#allocation3], %s401
        %s403 = sand.u32 %s279, 1
        %s404 = smul.addr %s403, 64
        %s405 = scalar_lea.vmem [#allocation2], %s404
        %p406 = scmp.lt.s32.totalorder %s25, 1
        %s407 = scalar_select %p406, %s25, 1
        %s408 = smul.addr %s407, 2
        %s409 = scalar_lea.vmem %s0, %s408
        %p410 = scmp.lt.s32.totalorder %s25, 1
        %s411 = scalar_select %p410, %s25, 1
        %s412 = smul.addr %s411, 4
        %s413 = scalar_lea.vmem %s1, %s412
        %p414 = scmp.lt.s32.totalorder %s25, 1
        %s415 = scalar_select %p414, %s25, 1
        %s416 = smul.addr %s415, 4
        %s417 = smul.addr %s416, 4
        %s418 = scalar_lea.vmem %s2, %s417
        %v420 = vld [vmem:[%s3] sm:$0xf]
        %v421 = vld [vmem:[%s3 + $0x4] sm:$0xf]
        %v422 = vld [vmem:[%s3 + $0x8] sm:$0xf]
        %v423 = vld [vmem:[%s3 + $0xc] sm:$0xf]
        %v424 = vld [vmem:[%s409] sm:$0x3]
        %v425 = vld [vmem:[%s6] sm:$0xff]
        %v426 = vld [vmem:[%s6 + $0x8] sm:$0xff]
        %v427 = vld [vmem:[%s6 + $0x10] sm:$0xff]
        %v428 = vld [vmem:[%s6 + $0x18] sm:$0xff]
        %430 = vset.pattern.permute.xlu0 0
        %431 = vperm.xlu0 %430, %v425
        %v432 = vpop.permute.xlu0 %431
        %435 = vset.pattern.permute.xlu0 0
        %436 = vperm.xlu0 %435, %v426
        %v437 = vpop.permute.xlu0 %436
        %440 = vset.pattern.permute.xlu0 0
        %441 = vperm.xlu0 %440, %v427
        %v442 = vpop.permute.xlu0 %441
        %445 = vset.pattern.permute.xlu0 0
        %446 = vperm.xlu0 %445, %v428
        %v447 = vpop.permute.xlu0 %446
        %v453 = vunpack.c.l.b16 %v420
        %v454 = vunpack.c.l.b16 %v421
        %v455 = vunpack.c.l.b16 %v422
        %v456 = vunpack.c.l.b16 %v423
        %v457 = vpack.c.b16 %v454, %v453
        %v458 = vpack.c.b16 %v456, %v455
        %vm459 = vcmask 31744
        %v461 = vsel %vm459, %v457, 0
        %v464 = vsel %vm459, %v458, 0
        %vm466 = vcmask 1041408
        %v468 = vsel %vm466, %v424, 0
        %470 = vmatprep.subr.bf16.mxu0 0
        %471 = vmatpush1.bf16.msra.mxu0 %v468
        %472 = vmatprep.subr.bf16.mxu0 0
        %473 = vmatpush1.bf16.msra.mxu0 0
        %474 = vmatprep.subr.bf16.mxu0 0
        %475 = vmatpush1.bf16.msra.mxu0 0
        %476 = vmatprep.subr.bf16.mxu0 0
        %477 = vmatpush1.bf16.msra.mxu0 0
        %478 = vmatprep.subr.bf16.mxu0 0
        %479 = vmatpush1.bf16.msra.mxu0 0
        %480 = vmatprep.subr.bf16.mxu0 0
        %481 = vmatpush1.bf16.msra.mxu0 0
        %482 = vmatprep.subr.bf16.mxu0 0
        %483 = vmatpush1.bf16.msra.mxu0 0
        %484 = vmatprep.subr.bf16.mxu0 0
        %485 = vmatpush1.bf16.msra.mxu0 0
        %486 = vmatprep.subr.bf16.mxu0 0
        %487 = vmatpush1.bf16.msra.mxu0 0
        %488 = vmatprep.subr.bf16.mxu0 0
        %489 = vmatpush1.bf16.msra.mxu0 0
        %490 = vmatprep.subr.bf16.mxu0 0
        %491 = vmatpush1.bf16.msra.mxu0 0
        %492 = vmatprep.subr.bf16.mxu0 0
        %493 = vmatpush1.bf16.msra.mxu0 0
        %494 = vmatprep.subr.bf16.mxu0 0
        %495 = vmatpush1.bf16.msra.mxu0 0
        %496 = vmatprep.subr.bf16.mxu0 0
        %497 = vmatpush1.bf16.msra.mxu0 0
        %498 = vmatprep.subr.bf16.mxu0 0
        %499 = vmatpush1.bf16.msra.mxu0 0
        %500 = vmatprep.subr.bf16.mxu0 0
        %501 = vmatpush1.bf16.msra.mxu0 0
        %502 = vmatprep.mubr.bf16.mxu0 0
        %503 = vmatmul.mubr.bf16.gmra.mrb[0].mxu0 %v461
        %v504 = vpop.f32.mrb[0].mxu0
        %v505 = vadd.f32 %v432, %v504
        %v506 = vpop.f32.mrb[0].mxu0
        %v507 = vpop.f32.mrb[0].mxu0
        %v508 = vadd.f32 %v437, %v507
        %v509 = vpop.f32.mrb[0].mxu0
        %510 = vmatprep.mubr.bf16.mxu0 0
        %511 = vmatmul.mubr.bf16.gmra.mrb[0].mxu0 %v464
        %v512 = vpop.f32.mrb[0].mxu0
        %v513 = vadd.f32 %v442, %v512
        %v514 = vpop.f32.mrb[0].mxu0
        %v515 = vpop.f32.mrb[0].mxu0
        %v516 = vadd.f32 %v447, %v515
        %v517 = vpop.f32.mrb[0].mxu0
        %518 = vdwg.mxu0
        %v519 = vld [vmem:[%s9] sm:$0xf]
        %v521 = vsel %vm459, %v505, 0
        %v524 = vsel %vm459, %v508, 0
        %v527 = vsel %vm459, %v513, 0
        %v530 = vsel %vm459, %v516, 0
        %vm532 = vcmask 1043456
        %v534 = vsel %vm532, %v519, 0
        %536 = vmatprep.subr.mxu0 0.0
        %537 = vmatpush1.msra.mxu0 %v534
        %538 = vmatprep.subr.mxu0 0.0
        %539 = vmatpush1.msra.mxu0 0.0
        %540 = vmatprep.subr.mxu0 0.0
        %541 = vmatpush1.msra.mxu0 0.0
        %542 = vmatprep.subr.mxu0 0.0
        %543 = vmatpush1.msra.mxu0 0.0
        %544 = vmatprep.subr.mxu0 0.0
        %545 = vmatpush1.msra.mxu0 0.0
        %546 = vmatprep.subr.mxu0 0.0
        %547 = vmatpush1.msra.mxu0 0.0
        %548 = vmatprep.subr.mxu0 0.0
        %549 = vmatpush1.msra.mxu0 0.0
        %550 = vmatprep.subr.mxu0 0.0
        %551 = vmatpush1.msra.mxu0 0.0
        %552 = vmatprep.subr.mxu0 0.0
        %553 = vmatpush1.msra.mxu0 0.0
        %554 = vmatprep.subr.mxu0 0.0
        %555 = vmatpush1.msra.mxu0 0.0
        %556 = vmatprep.subr.mxu0 0.0
        %557 = vmatpush1.msra.mxu0 0.0
        %558 = vmatprep.subr.mxu0 0.0
        %559 = vmatpush1.msra.mxu0 0.0
        %560 = vmatprep.subr.mxu0 0.0
        %561 = vmatpush1.msra.mxu0 0.0
        %562 = vmatprep.subr.mxu0 0.0
        %563 = vmatpush1.msra.mxu0 0.0
        %564 = vmatprep.subr.mxu0 0.0
        %565 = vmatpush1.msra.mxu0 0.0
        %566 = vmatprep.subr.mxu0 0.0
        %567 = vmatpush1.msra.mxu0 0.0
        %568 = vmatprep.subr.mxu0 0.0
        %569 = vmatpush1.msra.mxu0 0.0
        %570 = vmatprep.subr.mxu0 0.0
        %571 = vmatpush1.msra.mxu0 0.0
        %572 = vmatprep.subr.mxu0 0.0
        %573 = vmatpush1.msra.mxu0 0.0
        %574 = vmatprep.subr.mxu0 0.0
        %575 = vmatpush1.msra.mxu0 0.0
        %576 = vmatprep.subr.mxu0 0.0
        %577 = vmatpush1.msra.mxu0 0.0
        %578 = vmatprep.subr.mxu0 0.0
        %579 = vmatpush1.msra.mxu0 0.0
        %580 = vmatprep.subr.mxu0 0.0
        %581 = vmatpush1.msra.mxu0 0.0
        %582 = vmatprep.subr.mxu0 0.0
        %583 = vmatpush1.msra.mxu0 0.0
        %584 = vmatprep.subr.mxu0 0.0
        %585 = vmatpush1.msra.mxu0 0.0
        %586 = vmatprep.subr.mxu0 0.0
        %587 = vmatpush1.msra.mxu0 0.0
        %588 = vmatprep.subr.mxu0 0.0
        %589 = vmatpush1.msra.mxu0 0.0
        %590 = vmatprep.subr.mxu0 0.0
        %591 = vmatpush1.msra.mxu0 0.0
        %592 = vmatprep.subr.mxu0 0.0
        %593 = vmatpush1.msra.mxu0 0.0
        %594 = vmatprep.subr.mxu0 0.0
        %595 = vmatpush1.msra.mxu0 0.0
        %596 = vmatprep.subr.mxu0 0.0
        %597 = vmatpush1.msra.mxu0 0.0
        %598 = vmatprep.subr.mxu0 0.0
        %599 = vmatpush1.msra.mxu0 0.0
        %600 = vmatprep.mubr.f32.mxu0 0.0
        %601 = vmatmul.mubr.f32.gmra.mrb[0].mxu0 %v521
        %v602 = vpop.f32.mrb[0].mxu0
        %v603 = vadd.f32 0.0, %v602
        %v604 = vpop.f32.mrb[0].mxu0
        %605 = vmatprep.mubr.f32.mxu0 0.0
        %606 = vmatmul.mubr.f32.gmra.mrb[0].mxu0 %v524
        %v607 = vpop.f32.mrb[0].mxu0
        %v608 = vadd.f32 0.0, %v607
        %v609 = vpop.f32.mrb[0].mxu0
        %610 = vmatprep.mubr.f32.mxu0 0.0
        %611 = vmatmul.mubr.f32.gmra.mrb[0].mxu0 %v527
        %v612 = vpop.f32.mrb[0].mxu0
        %v613 = vadd.f32 0.0, %v612
        %v614 = vpop.f32.mrb[0].mxu0
        %615 = vmatprep.mubr.f32.mxu0 0.0
        %616 = vmatmul.mubr.f32.gmra.mrb[0].mxu0 %v530
        %v617 = vpop.f32.mrb[0].mxu0
        %v618 = vadd.f32 0.0, %v617
        %v619 = vpop.f32.mrb[0].mxu0
        %620 = vdwg.mxu0
        %621 = vrot.lane.b32.xlu0 %v505, 124
        %v622 = vpop.permute.xlu0 %621
        %623 = vrot.lane.b32.xlu0 %v508, 124
        %v624 = vpop.permute.xlu0 %623
        %625 = vrot.lane.b32.xlu0 %v513, 124
        %v626 = vpop.permute.xlu0 %625
        %627 = vrot.lane.b32.xlu0 %v516, 124
        %v628 = vpop.permute.xlu0 %627
        %v629 = vsel %vm459, %v622, 0
        %v631 = vsel %vm459, %v624, 0
        %v633 = vsel %vm459, %v626, 0
        %v635 = vsel %vm459, %v628, 0
        %637 = vmatprep.subr.mxu0 0.0
        %638 = vmatpush1.msra.mxu0 %v534
        %639 = vmatprep.subr.mxu0 0.0
        %640 = vmatpush1.msra.mxu0 0.0
        %641 = vmatprep.subr.mxu0 0.0
        %642 = vmatpush1.msra.mxu0 0.0
        %643 = vmatprep.subr.mxu0 0.0
        %644 = vmatpush1.msra.mxu0 0.0
        %645 = vmatprep.subr.mxu0 0.0
        %646 = vmatpush1.msra.mxu0 0.0
        %647 = vmatprep.subr.mxu0 0.0
        %648 = vmatpush1.msra.mxu0 0.0
        %649 = vmatprep.subr.mxu0 0.0
        %650 = vmatpush1.msra.mxu0 0.0
        %651 = vmatprep.subr.mxu0 0.0
        %652 = vmatpush1.msra.mxu0 0.0
        %653 = vmatprep.subr.mxu0 0.0
        %654 = vmatpush1.msra.mxu0 0.0
        %655 = vmatprep.subr.mxu0 0.0
        %656 = vmatpush1.msra.mxu0 0.0
        %657 = vmatprep.subr.mxu0 0.0
        %658 = vmatpush1.msra.mxu0 0.0
        %659 = vmatprep.subr.mxu0 0.0
        %660 = vmatpush1.msra.mxu0 0.0
        %661 = vmatprep.subr.mxu0 0.0
        %662 = vmatpush1.msra.mxu0 0.0
        %663 = vmatprep.subr.mxu0 0.0
        %664 = vmatpush1.msra.mxu0 0.0
        %665 = vmatprep.subr.mxu0 0.0
        %666 = vmatpush1.msra.mxu0 0.0
        %667 = vmatprep.subr.mxu0 0.0
        %668 = vmatpush1.msra.mxu0 0.0
        %669 = vmatprep.subr.mxu0 0.0
        %670 = vmatpush1.msra.mxu0 0.0
        %671 = vmatprep.subr.mxu0 0.0
        %672 = vmatpush1.msra.mxu0 0.0
        %673 = vmatprep.subr.mxu0 0.0
        %674 = vmatpush1.msra.mxu0 0.0
        %675 = vmatprep.subr.mxu0 0.0
        %676 = vmatpush1.msra.mxu0 0.0
        %677 = vmatprep.subr.mxu0 0.0
        %678 = vmatpush1.msra.mxu0 0.0
        %679 = vmatprep.subr.mxu0 0.0
        %680 = vmatpush1.msra.mxu0 0.0
        %681 = vmatprep.subr.mxu0 0.0
        %682 = vmatpush1.msra.mxu0 0.0
        %683 = vmatprep.subr.mxu0 0.0
        %684 = vmatpush1.msra.mxu0 0.0
        %685 = vmatprep.subr.mxu0 0.0
        %686 = vmatpush1.msra.mxu0 0.0
        %687 = vmatprep.subr.mxu0 0.0
        %688 = vmatpush1.msra.mxu0 0.0
        %689 = vmatprep.subr.mxu0 0.0
        %690 = vmatpush1.msra.mxu0 0.0
        %691 = vmatprep.subr.mxu0 0.0
        %692 = vmatpush1.msra.mxu0 0.0
        %693 = vmatprep.subr.mxu0 0.0
        %694 = vmatpush1.msra.mxu0 0.0
        %695 = vmatprep.subr.mxu0 0.0
        %696 = vmatpush1.msra.mxu0 0.0
        %697 = vmatprep.subr.mxu0 0.0
        %698 = vmatpush1.msra.mxu0 0.0
        %699 = vmatprep.subr.mxu0 0.0
        %700 = vmatpush1.msra.mxu0 0.0
        %701 = vmatprep.mubr.f32.mxu0 0.0
        %702 = vmatmul.mubr.f32.gmra.mrb[0].mxu0 %v629
        %v703 = vpop.f32.mrb[0].mxu0
        %v704 = vadd.f32 0.0, %v703
        %v705 = vpop.f32.mrb[0].mxu0
        %706 = vmatprep.mubr.f32.mxu0 0.0
        %707 = vmatmul.mubr.f32.gmra.mrb[0].mxu0 %v631
        %v708 = vpop.f32.mrb[0].mxu0
        %v709 = vadd.f32 0.0, %v708
        %v710 = vpop.f32.mrb[0].mxu0
        %711 = vmatprep.mubr.f32.mxu0 0.0
        %712 = vmatmul.mubr.f32.gmra.mrb[0].mxu0 %v633
        %v713 = vpop.f32.mrb[0].mxu0
        %v714 = vadd.f32 0.0, %v713
        %v715 = vpop.f32.mrb[0].mxu0
        %716 = vmatprep.mubr.f32.mxu0 0.0
        %717 = vmatmul.mubr.f32.gmra.mrb[0].mxu0 %v635
        %v718 = vpop.f32.mrb[0].mxu0
        %v719 = vadd.f32 0.0, %v718
        %v720 = vpop.f32.mrb[0].mxu0
        %721 = vdwg.mxu0
        %722 = vrot.lane.b32.xlu0 %v505, 120
        %v723 = vpop.permute.xlu0 %722
        %724 = vrot.lane.b32.xlu0 %v508, 120
        %v725 = vpop.permute.xlu0 %724
        %726 = vrot.lane.b32.xlu0 %v513, 120
        %v727 = vpop.permute.xlu0 %726
        %728 = vrot.lane.b32.xlu0 %v516, 120
        %v729 = vpop.permute.xlu0 %728
        %v730 = vsel %vm459, %v723, 0
        %v732 = vsel %vm459, %v725, 0
        %v734 = vsel %vm459, %v727, 0
        %v736 = vsel %vm459, %v729, 0
        %738 = vmatprep.subr.mxu0 0.0
        %739 = vmatpush1.msra.mxu0 %v534
        %740 = vmatprep.subr.mxu0 0.0
        %741 = vmatpush1.msra.mxu0 0.0
        %742 = vmatprep.subr.mxu0 0.0
        %743 = vmatpush1.msra.mxu0 0.0
        %744 = vmatprep.subr.mxu0 0.0
        %745 = vmatpush1.msra.mxu0 0.0
        %746 = vmatprep.subr.mxu0 0.0
        %747 = vmatpush1.msra.mxu0 0.0
        %748 = vmatprep.subr.mxu0 0.0
        %749 = vmatpush1.msra.mxu0 0.0
        %750 = vmatprep.subr.mxu0 0.0
        %751 = vmatpush1.msra.mxu0 0.0
        %752 = vmatprep.subr.mxu0 0.0
        %753 = vmatpush1.msra.mxu0 0.0
        %754 = vmatprep.subr.mxu0 0.0
        %755 = vmatpush1.msra.mxu0 0.0
        %756 = vmatprep.subr.mxu0 0.0
        %757 = vmatpush1.msra.mxu0 0.0
        %758 = vmatprep.subr.mxu0 0.0
        %759 = vmatpush1.msra.mxu0 0.0
        %760 = vmatprep.subr.mxu0 0.0
        %761 = vmatpush1.msra.mxu0 0.0
        %762 = vmatprep.subr.mxu0 0.0
        %763 = vmatpush1.msra.mxu0 0.0
        %764 = vmatprep.subr.mxu0 0.0
        %765 = vmatpush1.msra.mxu0 0.0
        %766 = vmatprep.subr.mxu0 0.0
        %767 = vmatpush1.msra.mxu0 0.0
        %768 = vmatprep.subr.mxu0 0.0
        %769 = vmatpush1.msra.mxu0 0.0
        %770 = vmatprep.subr.mxu0 0.0
        %771 = vmatpush1.msra.mxu0 0.0
        %772 = vmatprep.subr.mxu0 0.0
        %773 = vmatpush1.msra.mxu0 0.0
        %774 = vmatprep.subr.mxu0 0.0
        %775 = vmatpush1.msra.mxu0 0.0
        %776 = vmatprep.subr.mxu0 0.0
        %777 = vmatpush1.msra.mxu0 0.0
        %778 = vmatprep.subr.mxu0 0.0
        %779 = vmatpush1.msra.mxu0 0.0
        %780 = vmatprep.subr.mxu0 0.0
        %781 = vmatpush1.msra.mxu0 0.0
        %782 = vmatprep.subr.mxu0 0.0
        %783 = vmatpush1.msra.mxu0 0.0
        %784 = vmatprep.subr.mxu0 0.0
        %785 = vmatpush1.msra.mxu0 0.0
        %786 = vmatprep.subr.mxu0 0.0
        %787 = vmatpush1.msra.mxu0 0.0
        %788 = vmatprep.subr.mxu0 0.0
        %789 = vmatpush1.msra.mxu0 0.0
        %790 = vmatprep.subr.mxu0 0.0
        %791 = vmatpush1.msra.mxu0 0.0
        %792 = vmatprep.subr.mxu0 0.0
        %793 = vmatpush1.msra.mxu0 0.0
        %794 = vmatprep.subr.mxu0 0.0
        %795 = vmatpush1.msra.mxu0 0.0
        %796 = vmatprep.subr.mxu0 0.0
        %797 = vmatpush1.msra.mxu0 0.0
        %798 = vmatprep.subr.mxu0 0.0
        %799 = vmatpush1.msra.mxu0 0.0
        %800 = vmatprep.subr.mxu0 0.0
        %801 = vmatpush1.msra.mxu0 0.0
        %802 = vmatprep.mubr.f32.mxu0 0.0
        %803 = vmatmul.mubr.f32.gmra.mrb[0].mxu0 %v730
        %v804 = vpop.f32.mrb[0].mxu0
        %v805 = vadd.f32 0.0, %v804
        %v806 = vpop.f32.mrb[0].mxu0
        %807 = vmatprep.mubr.f32.mxu0 0.0
        %808 = vmatmul.mubr.f32.gmra.mrb[0].mxu0 %v732
        %v809 = vpop.f32.mrb[0].mxu0
        %v810 = vadd.f32 0.0, %v809
        %v811 = vpop.f32.mrb[0].mxu0
        %812 = vmatprep.mubr.f32.mxu0 0.0
        %813 = vmatmul.mubr.f32.gmra.mrb[0].mxu0 %v734
        %v814 = vpop.f32.mrb[0].mxu0
        %v815 = vadd.f32 0.0, %v814
        %v816 = vpop.f32.mrb[0].mxu0
        %817 = vmatprep.mubr.f32.mxu0 0.0
        %818 = vmatmul.mubr.f32.gmra.mrb[0].mxu0 %v736
        %v819 = vpop.f32.mrb[0].mxu0
        %v820 = vadd.f32 0.0, %v819
        %v821 = vpop.f32.mrb[0].mxu0
        %822 = vdwg.mxu0
        %823 = vrot.lane.b32.xlu0 %v505, 116
        %v824 = vpop.permute.xlu0 %823
        %825 = vrot.lane.b32.xlu0 %v508, 116
        %v826 = vpop.permute.xlu0 %825
        %827 = vrot.lane.b32.xlu0 %v513, 116
        %v828 = vpop.permute.xlu0 %827
        %829 = vrot.lane.b32.xlu0 %v516, 116
        %v830 = vpop.permute.xlu0 %829
        %v831 = vsel %vm459, %v824, 0
        %v833 = vsel %vm459, %v826, 0
        %v835 = vsel %vm459, %v828, 0
        %v837 = vsel %vm459, %v830, 0
        %839 = vmatprep.subr.mxu0 0.0
        %840 = vmatpush1.msra.mxu0 %v534
        %841 = vmatprep.subr.mxu0 0.0
        %842 = vmatpush1.msra.mxu0 0.0
        %843 = vmatprep.subr.mxu0 0.0
        %844 = vmatpush1.msra.mxu0 0.0
        %845 = vmatprep.subr.mxu0 0.0
        %846 = vmatpush1.msra.mxu0 0.0
        %847 = vmatprep.subr.mxu0 0.0
        %848 = vmatpush1.msra.mxu0 0.0
        %849 = vmatprep.subr.mxu0 0.0
        %850 = vmatpush1.msra.mxu0 0.0
        %851 = vmatprep.subr.mxu0 0.0
        %852 = vmatpush1.msra.mxu0 0.0
        %853 = vmatprep.subr.mxu0 0.0
        %854 = vmatpush1.msra.mxu0 0.0
        %855 = vmatprep.subr.mxu0 0.0
        %856 = vmatpush1.msra.mxu0 0.0
        %857 = vmatprep.subr.mxu0 0.0
        %858 = vmatpush1.msra.mxu0 0.0
        %859 = vmatprep.subr.mxu0 0.0
        %860 = vmatpush1.msra.mxu0 0.0
        %861 = vmatprep.subr.mxu0 0.0
        %862 = vmatpush1.msra.mxu0 0.0
        %863 = vmatprep.subr.mxu0 0.0
        %864 = vmatpush1.msra.mxu0 0.0
        %865 = vmatprep.subr.mxu0 0.0
        %866 = vmatpush1.msra.mxu0 0.0
        %867 = vmatprep.subr.mxu0 0.0
        %868 = vmatpush1.msra.mxu0 0.0
        %869 = vmatprep.subr.mxu0 0.0
        %870 = vmatpush1.msra.mxu0 0.0
        %871 = vmatprep.subr.mxu0 0.0
        %872 = vmatpush1.msra.mxu0 0.0
        %873 = vmatprep.subr.mxu0 0.0
        %874 = vmatpush1.msra.mxu0 0.0
        %875 = vmatprep.subr.mxu0 0.0
        %876 = vmatpush1.msra.mxu0 0.0
        %877 = vmatprep.subr.mxu0 0.0
        %878 = vmatpush1.msra.mxu0 0.0
        %879 = vmatprep.subr.mxu0 0.0
        %880 = vmatpush1.msra.mxu0 0.0
        %881 = vmatprep.subr.mxu0 0.0
        %882 = vmatpush1.msra.mxu0 0.0
        %883 = vmatprep.subr.mxu0 0.0
        %884 = vmatpush1.msra.mxu0 0.0
        %885 = vmatprep.subr.mxu0 0.0
        %886 = vmatpush1.msra.mxu0 0.0
        %887 = vmatprep.subr.mxu0 0.0
        %888 = vmatpush1.msra.mxu0 0.0
        %889 = vmatprep.subr.mxu0 0.0
        %890 = vmatpush1.msra.mxu0 0.0
        %891 = vmatprep.subr.mxu0 0.0
        %892 = vmatpush1.msra.mxu0 0.0
        %893 = vmatprep.subr.mxu0 0.0
        %894 = vmatpush1.msra.mxu0 0.0
        %895 = vmatprep.subr.mxu0 0.0
        %896 = vmatpush1.msra.mxu0 0.0
        %897 = vmatprep.subr.mxu0 0.0
        %898 = vmatpush1.msra.mxu0 0.0
        %899 = vmatprep.subr.mxu0 0.0
        %900 = vmatpush1.msra.mxu0 0.0
        %901 = vmatprep.subr.mxu0 0.0
        %902 = vmatpush1.msra.mxu0 0.0
        %903 = vmatprep.mubr.f32.mxu0 0.0
        %904 = vmatmul.mubr.f32.gmra.mrb[0].mxu0 %v831
        %v905 = vpop.f32.mrb[0].mxu0
        %v906 = vadd.f32 0.0, %v905
        %v907 = vpop.f32.mrb[0].mxu0
        %908 = vmatprep.mubr.f32.mxu0 0.0
        %909 = vmatmul.mubr.f32.gmra.mrb[0].mxu0 %v833
        %v910 = vpop.f32.mrb[0].mxu0
        %v911 = vadd.f32 0.0, %v910
        %v912 = vpop.f32.mrb[0].mxu0
        %913 = vmatprep.mubr.f32.mxu0 0.0
        %914 = vmatmul.mubr.f32.gmra.mrb[0].mxu0 %v835
        %v915 = vpop.f32.mrb[0].mxu0
        %v916 = vadd.f32 0.0, %v915
        %v917 = vpop.f32.mrb[0].mxu0
        %918 = vmatprep.mubr.f32.mxu0 0.0
        %919 = vmatmul.mubr.f32.gmra.mrb[0].mxu0 %v837
        %v920 = vpop.f32.mrb[0].mxu0
        %v921 = vadd.f32 0.0, %v920
        %v922 = vpop.f32.mrb[0].mxu0
        %923 = vdwg.mxu0
        %928 = vrot.lane.b32.xlu0 %v603, 8
        %v929 = vpop.permute.xlu0 %928
        %930 = vrot.lane.b32.xlu0 %v608, 8
        %v931 = vpop.permute.xlu0 %930
        %932 = vrot.lane.b32.xlu0 %v613, 8
        %v933 = vpop.permute.xlu0 %932
        %934 = vrot.lane.b32.xlu0 %v618, 8
        %v935 = vpop.permute.xlu0 %934
        %944 = vrot.lane.b32.xlu0 %v704, 16
        %v945 = vpop.permute.xlu0 %944
        %946 = vrot.lane.b32.xlu0 %v709, 16
        %v947 = vpop.permute.xlu0 %946
        %948 = vrot.lane.b32.xlu0 %v714, 16
        %v949 = vpop.permute.xlu0 %948
        %950 = vrot.lane.b32.xlu0 %v719, 16
        %v951 = vpop.permute.xlu0 %950
        %956 = vrot.lane.b32.xlu0 %v704, 24
        %v957 = vpop.permute.xlu0 %956
        %958 = vrot.lane.b32.xlu0 %v709, 24
        %v959 = vpop.permute.xlu0 %958
        %960 = vrot.lane.b32.xlu0 %v714, 24
        %v961 = vpop.permute.xlu0 %960
        %962 = vrot.lane.b32.xlu0 %v719, 24
        %v963 = vpop.permute.xlu0 %962
        %972 = vrot.lane.b32.xlu0 %v805, 32
        %v973 = vpop.permute.xlu0 %972
        %974 = vrot.lane.b32.xlu0 %v810, 32
        %v975 = vpop.permute.xlu0 %974
        %976 = vrot.lane.b32.xlu0 %v815, 32
        %v977 = vpop.permute.xlu0 %976
        %978 = vrot.lane.b32.xlu0 %v820, 32
        %v979 = vpop.permute.xlu0 %978
        %984 = vrot.lane.b32.xlu0 %v805, 40
        %v985 = vpop.permute.xlu0 %984
        %986 = vrot.lane.b32.xlu0 %v810, 40
        %v987 = vpop.permute.xlu0 %986
        %988 = vrot.lane.b32.xlu0 %v815, 40
        %v989 = vpop.permute.xlu0 %988
        %990 = vrot.lane.b32.xlu0 %v820, 40
        %v991 = vpop.permute.xlu0 %990
        %1000 = vrot.lane.b32.xlu0 %v906, 48
        %v1001 = vpop.permute.xlu0 %1000
        %1002 = vrot.lane.b32.xlu0 %v911, 48
        %v1003 = vpop.permute.xlu0 %1002
        %1004 = vrot.lane.b32.xlu0 %v916, 48
        %v1005 = vpop.permute.xlu0 %1004
        %1006 = vrot.lane.b32.xlu0 %v921, 48
        %v1007 = vpop.permute.xlu0 %1006
        %1012 = vrot.lane.b32.xlu0 %v906, 56
        %v1013 = vpop.permute.xlu0 %1012
        %1014 = vrot.lane.b32.xlu0 %v911, 56
        %v1015 = vpop.permute.xlu0 %1014
        %1016 = vrot.lane.b32.xlu0 %v916, 56
        %v1017 = vpop.permute.xlu0 %1016
        %1018 = vrot.lane.b32.xlu0 %v921, 56
        %v1019 = vpop.permute.xlu0 %1018
        %vm1024 = vcmask 64512
        %v1025 = vsel %vm1024, %v603, %v929
        %v1026 = vsel %vm1024, %v608, %v931
        %v1027 = vsel %vm1024, %v613, %v933
        %v1028 = vsel %vm1024, %v618, %v935
        %vm1029 = vcmask 130048
        %v1030 = vsel %vm1029, %v1025, %v945
        %v1031 = vsel %vm1029, %v1026, %v947
        %v1032 = vsel %vm1029, %v1027, %v949
        %v1033 = vsel %vm1029, %v1028, %v951
        %vm1034 = vcmask 195584
        %v1035 = vsel %vm1034, %v1030, %v957
        %v1036 = vsel %vm1034, %v1031, %v959
        %v1037 = vsel %vm1034, %v1032, %v961
        %v1038 = vsel %vm1034, %v1033, %v963
        %vm1039 = vcmask 261120
        %v1040 = vsel %vm1039, %v1035, %v973
        %v1041 = vsel %vm1039, %v1036, %v975
        %v1042 = vsel %vm1039, %v1037, %v977
        %v1043 = vsel %vm1039, %v1038, %v979
        %vm1044 = vcmask 326656
        %v1045 = vsel %vm1044, %v1040, %v985
        %v1046 = vsel %vm1044, %v1041, %v987
        %v1047 = vsel %vm1044, %v1042, %v989
        %v1048 = vsel %vm1044, %v1043, %v991
        %vm1049 = vcmask 392192
        %v1050 = vsel %vm1049, %v1045, %v1001
        %v1051 = vsel %vm1049, %v1046, %v1003
        %v1052 = vsel %vm1049, %v1047, %v1005
        %v1053 = vsel %vm1049, %v1048, %v1007
        %vm1054 = vcmask 457728
        %v1055 = vsel %vm1054, %v1050, %v1013
        %v1056 = vsel %vm1054, %v1051, %v1015
        %v1057 = vsel %vm1054, %v1052, %v1017
        %v1058 = vsel %vm1054, %v1053, %v1019
        %v1059 = vld [vmem:[%s4] sm:$0xf]
        %v1060 = vld [vmem:[%s4 + $0x4] sm:$0xf]
        %v1061 = vld [vmem:[%s4 + $0x8] sm:$0xf]
        %v1062 = vld [vmem:[%s4 + $0xc] sm:$0xf]
        %v1063 = vld [vmem:[%s413] sm:$0xf]
        %v1064 = vld [vmem:[%s7] sm:$0xff]
        %v1065 = vld [vmem:[%s7 + $0x8] sm:$0xff]
        %v1066 = vld [vmem:[%s7 + $0x10] sm:$0xff]
        %v1067 = vld [vmem:[%s7 + $0x18] sm:$0xff]
        %1069 = vset.pattern.permute.xlu0 0
        %1070 = vperm.xlu0 %1069, %v1064
        %v1071 = vpop.permute.xlu0 %1070
        %1074 = vset.pattern.permute.xlu0 0
        %1075 = vperm.xlu0 %1074, %v1065
        %v1076 = vpop.permute.xlu0 %1075
        %1079 = vset.pattern.permute.xlu0 0
        %1080 = vperm.xlu0 %1079, %v1066
        %v1081 = vpop.permute.xlu0 %1080
        %1084 = vset.pattern.permute.xlu0 0
        %1085 = vperm.xlu0 %1084, %v1067
        %v1086 = vpop.permute.xlu0 %1085
        %v1092 = vunpack.c.l.b16 %v1059
        %v1093 = vunpack.c.l.b16 %v1060
        %v1094 = vunpack.c.l.b16 %v1061
        %v1095 = vunpack.c.l.b16 %v1062
        %v1096 = vpack.c.b16 %v1093, %v1092
        %v1097 = vpack.c.b16 %v1095, %v1094
        %v1099 = vsel %vm1024, %v1096, 0
        %v1102 = vsel %vm1024, %v1097, 0
        %v1105 = vsel %vm532, %v1063, 0
        %1107 = vmatprep.subr.bf16.mxu0 0
        %1108 = vmatpush1.bf16.msra.mxu0 %v1105
        %1109 = vmatprep.subr.bf16.mxu0 0
        %1110 = vmatpush1.bf16.msra.mxu0 0
        %1111 = vmatprep.subr.bf16.mxu0 0
        %1112 = vmatpush1.bf16.msra.mxu0 0
        %1113 = vmatprep.subr.bf16.mxu0 0
        %1114 = vmatpush1.bf16.msra.mxu0 0
        %1115 = vmatprep.subr.bf16.mxu0 0
        %1116 = vmatpush1.bf16.msra.mxu0 0
        %1117 = vmatprep.subr.bf16.mxu0 0
        %1118 = vmatpush1.bf16.msra.mxu0 0
        %1119 = vmatprep.subr.bf16.mxu0 0
        %1120 = vmatpush1.bf16.msra.mxu0 0
        %1121 = vmatprep.subr.bf16.mxu0 0
        %1122 = vmatpush1.bf16.msra.mxu0 0
        %1123 = vmatprep.subr.bf16.mxu0 0
        %1124 = vmatpush1.bf16.msra.mxu0 0
        %1125 = vmatprep.subr.bf16.mxu0 0
        %1126 = vmatpush1.bf16.msra.mxu0 0
        %1127 = vmatprep.subr.bf16.mxu0 0
        %1128 = vmatpush1.bf16.msra.mxu0 0
        %1129 = vmatprep.subr.bf16.mxu0 0
        %1130 = vmatpush1.bf16.msra.mxu0 0
        %1131 = vmatprep.subr.bf16.mxu0 0
        %1132 = vmatpush1.bf16.msra.mxu0 0
        %1133 = vmatprep.subr.bf16.mxu0 0
        %1134 = vmatpush1.bf16.msra.mxu0 0
        %1135 = vmatprep.subr.bf16.mxu0 0
        %1136 = vmatpush1.bf16.msra.mxu0 0
        %1137 = vmatprep.subr.bf16.mxu0 0
        %1138 = vmatpush1.bf16.msra.mxu0 0
        %1139 = vmatprep.mubr.bf16.mxu0 0
        %1140 = vmatmul.mubr.bf16.gmra.mrb[0].mxu0 %v1099
        %v1141 = vpop.f32.mrb[0].mxu0
        %v1142 = vadd.f32 %v1071, %v1141
        %v1143 = vpop.f32.mrb[0].mxu0
        %v1144 = vpop.f32.mrb[0].mxu0
        %v1145 = vadd.f32 %v1076, %v1144
        %v1146 = vpop.f32.mrb[0].mxu0
        %1147 = vmatprep.mubr.bf16.mxu0 0
        %1148 = vmatmul.mubr.bf16.gmra.mrb[0].mxu0 %v1102
        %v1149 = vpop.f32.mrb[0].mxu0
        %v1150 = vadd.f32 %v1081, %v1149
        %v1151 = vpop.f32.mrb[0].mxu0
        %v1152 = vpop.f32.mrb[0].mxu0
        %v1153 = vadd.f32 %v1086, %v1152
        %v1154 = vpop.f32.mrb[0].mxu0
        %1155 = vdwg.mxu0
        %v1156 = vadd.f32 %v1142, %v1055
        %v1157 = vadd.f32 %v1145, %v1056
        %v1158 = vadd.f32 %v1150, %v1057
        %v1159 = vadd.f32 %v1153, %v1058
        %v1160 = vld [vmem:[%s10] sm:$0xff]
        %v1162 = vsel %vm1024, %v1156, 0
        %v1165 = vsel %vm1024, %v1157, 0
        %v1168 = vsel %vm1024, %v1158, 0
        %v1171 = vsel %vm1024, %v1159, 0
        %1173 = vmatprep.subr.mxu0 0.0
        %1174 = vmatpush1.msra.mxu0 %v1160
        %1175 = vmatprep.subr.mxu0 0.0
        %1176 = vmatpush1.msra.mxu0 0.0
        %1177 = vmatprep.subr.mxu0 0.0
        %1178 = vmatpush1.msra.mxu0 0.0
        %1179 = vmatprep.subr.mxu0 0.0
        %1180 = vmatpush1.msra.mxu0 0.0
        %1181 = vmatprep.subr.mxu0 0.0
        %1182 = vmatpush1.msra.mxu0 0.0
        %1183 = vmatprep.subr.mxu0 0.0
        %1184 = vmatpush1.msra.mxu0 0.0
        %1185 = vmatprep.subr.mxu0 0.0
        %1186 = vmatpush1.msra.mxu0 0.0
        %1187 = vmatprep.subr.mxu0 0.0
        %1188 = vmatpush1.msra.mxu0 0.0
        %1189 = vmatprep.subr.mxu0 0.0
        %1190 = vmatpush1.msra.mxu0 0.0
        %1191 = vmatprep.subr.mxu0 0.0
        %1192 = vmatpush1.msra.mxu0 0.0
        %1193 = vmatprep.subr.mxu0 0.0
        %1194 = vmatpush1.msra.mxu0 0.0
        %1195 = vmatprep.subr.mxu0 0.0
        %1196 = vmatpush1.msra.mxu0 0.0
        %1197 = vmatprep.subr.mxu0 0.0
        %1198 = vmatpush1.msra.mxu0 0.0
        %1199 = vmatprep.subr.mxu0 0.0
        %1200 = vmatpush1.msra.mxu0 0.0
        %1201 = vmatprep.subr.mxu0 0.0
        %1202 = vmatpush1.msra.mxu0 0.0
        %1203 = vmatprep.subr.mxu0 0.0
        %1204 = vmatpush1.msra.mxu0 0.0
        %1205 = vmatprep.subr.mxu0 0.0
        %1206 = vmatpush1.msra.mxu0 0.0
        %1207 = vmatprep.subr.mxu0 0.0
        %1208 = vmatpush1.msra.mxu0 0.0
        %1209 = vmatprep.subr.mxu0 0.0
        %1210 = vmatpush1.msra.mxu0 0.0
        %1211 = vmatprep.subr.mxu0 0.0
        %1212 = vmatpush1.msra.mxu0 0.0
        %1213 = vmatprep.subr.mxu0 0.0
        %1214 = vmatpush1.msra.mxu0 0.0
        %1215 = vmatprep.subr.mxu0 0.0
        %1216 = vmatpush1.msra.mxu0 0.0
        %1217 = vmatprep.subr.mxu0 0.0
        %1218 = vmatpush1.msra.mxu0 0.0
        %1219 = vmatprep.subr.mxu0 0.0
        %1220 = vmatpush1.msra.mxu0 0.0
        %1221 = vmatprep.subr.mxu0 0.0
        %1222 = vmatpush1.msra.mxu0 0.0
        %1223 = vmatprep.subr.mxu0 0.0
        %1224 = vmatpush1.msra.mxu0 0.0
        %1225 = vmatprep.subr.mxu0 0.0
        %1226 = vmatpush1.msra.mxu0 0.0
        %1227 = vmatprep.subr.mxu0 0.0
        %1228 = vmatpush1.msra.mxu0 0.0
        %1229 = vmatprep.subr.mxu0 0.0
        %1230 = vmatpush1.msra.mxu0 0.0
        %1231 = vmatprep.subr.mxu0 0.0
        %1232 = vmatpush1.msra.mxu0 0.0
        %1233 = vmatprep.subr.mxu0 0.0
        %1234 = vmatpush1.msra.mxu0 0.0
        %1235 = vmatprep.subr.mxu0 0.0
        %1236 = vmatpush1.msra.mxu0 0.0
        %1237 = vmatprep.mubr.f32.mxu0 0.0
        %1238 = vmatmul.mubr.f32.gmra.mrb[0].mxu0 %v1162
        %v1239 = vpop.f32.mrb[0].mxu0
        %v1240 = vadd.f32 0.0, %v1239
        %v1241 = vpop.f32.mrb[0].mxu0
        %1242 = vmatprep.mubr.f32.mxu0 0.0
        %1243 = vmatmul.mubr.f32.gmra.mrb[0].mxu0 %v1165
        %v1244 = vpop.f32.mrb[0].mxu0
        %v1245 = vadd.f32 0.0, %v1244
        %v1246 = vpop.f32.mrb[0].mxu0
        %1247 = vmatprep.mubr.f32.mxu0 0.0
        %1248 = vmatmul.mubr.f32.gmra.mrb[0].mxu0 %v1168
        %v1249 = vpop.f32.mrb[0].mxu0
        %v1250 = vadd.f32 0.0, %v1249
        %v1251 = vpop.f32.mrb[0].mxu0
        %1252 = vmatprep.mubr.f32.mxu0 0.0
        %1253 = vmatmul.mubr.f32.gmra.mrb[0].mxu0 %v1171
        %v1254 = vpop.f32.mrb[0].mxu0
        %v1255 = vadd.f32 0.0, %v1254
        %v1256 = vpop.f32.mrb[0].mxu0
        %1257 = vdwg.mxu0
        %1258 = vrot.lane.b32.xlu0 %v1156, 120
        %v1259 = vpop.permute.xlu0 %1258
        %1260 = vrot.lane.b32.xlu0 %v1157, 120
        %v1261 = vpop.permute.xlu0 %1260
        %1262 = vrot.lane.b32.xlu0 %v1158, 120
        %v1263 = vpop.permute.xlu0 %1262
        %1264 = vrot.lane.b32.xlu0 %v1159, 120
        %v1265 = vpop.permute.xlu0 %1264
        %v1266 = vsel %vm1024, %v1259, 0
        %v1268 = vsel %vm1024, %v1261, 0
        %v1270 = vsel %vm1024, %v1263, 0
        %v1272 = vsel %vm1024, %v1265, 0
        %1274 = vmatprep.subr.mxu0 0.0
        %1275 = vmatpush1.msra.mxu0 %v1160
        %1276 = vmatprep.subr.mxu0 0.0
        %1277 = vmatpush1.msra.mxu0 0.0
        %1278 = vmatprep.subr.mxu0 0.0
        %1279 = vmatpush1.msra.mxu0 0.0
        %1280 = vmatprep.subr.mxu0 0.0
        %1281 = vmatpush1.msra.mxu0 0.0
        %1282 = vmatprep.subr.mxu0 0.0
        %1283 = vmatpush1.msra.mxu0 0.0
        %1284 = vmatprep.subr.mxu0 0.0
        %1285 = vmatpush1.msra.mxu0 0.0
        %1286 = vmatprep.subr.mxu0 0.0
        %1287 = vmatpush1.msra.mxu0 0.0
        %1288 = vmatprep.subr.mxu0 0.0
        %1289 = vmatpush1.msra.mxu0 0.0
        %1290 = vmatprep.subr.mxu0 0.0
        %1291 = vmatpush1.msra.mxu0 0.0
        %1292 = vmatprep.subr.mxu0 0.0
        %1293 = vmatpush1.msra.mxu0 0.0
        %1294 = vmatprep.subr.mxu0 0.0
        %1295 = vmatpush1.msra.mxu0 0.0
        %1296 = vmatprep.subr.mxu0 0.0
        %1297 = vmatpush1.msra.mxu0 0.0
        %1298 = vmatprep.subr.mxu0 0.0
        %1299 = vmatpush1.msra.mxu0 0.0
        %1300 = vmatprep.subr.mxu0 0.0
        %1301 = vmatpush1.msra.mxu0 0.0
        %1302 = vmatprep.subr.mxu0 0.0
        %1303 = vmatpush1.msra.mxu0 0.0
        %1304 = vmatprep.subr.mxu0 0.0
        %1305 = vmatpush1.msra.mxu0 0.0
        %1306 = vmatprep.subr.mxu0 0.0
        %1307 = vmatpush1.msra.mxu0 0.0
        %1308 = vmatprep.subr.mxu0 0.0
        %1309 = vmatpush1.msra.mxu0 0.0
        %1310 = vmatprep.subr.mxu0 0.0
        %1311 = vmatpush1.msra.mxu0 0.0
        %1312 = vmatprep.subr.mxu0 0.0
        %1313 = vmatpush1.msra.mxu0 0.0
        %1314 = vmatprep.subr.mxu0 0.0
        %1315 = vmatpush1.msra.mxu0 0.0
        %1316 = vmatprep.subr.mxu0 0.0
        %1317 = vmatpush1.msra.mxu0 0.0
        %1318 = vmatprep.subr.mxu0 0.0
        %1319 = vmatpush1.msra.mxu0 0.0
        %1320 = vmatprep.subr.mxu0 0.0
        %1321 = vmatpush1.msra.mxu0 0.0
        %1322 = vmatprep.subr.mxu0 0.0
        %1323 = vmatpush1.msra.mxu0 0.0
        %1324 = vmatprep.subr.mxu0 0.0
        %1325 = vmatpush1.msra.mxu0 0.0
        %1326 = vmatprep.subr.mxu0 0.0
        %1327 = vmatpush1.msra.mxu0 0.0
        %1328 = vmatprep.subr.mxu0 0.0
        %1329 = vmatpush1.msra.mxu0 0.0
        %1330 = vmatprep.subr.mxu0 0.0
        %1331 = vmatpush1.msra.mxu0 0.0
        %1332 = vmatprep.subr.mxu0 0.0
        %1333 = vmatpush1.msra.mxu0 0.0
        %1334 = vmatprep.subr.mxu0 0.0
        %1335 = vmatpush1.msra.mxu0 0.0
        %1336 = vmatprep.subr.mxu0 0.0
        %1337 = vmatpush1.msra.mxu0 0.0
        %1338 = vmatprep.mubr.f32.mxu0 0.0
        %1339 = vmatmul.mubr.f32.gmra.mrb[0].mxu0 %v1266
        %v1340 = vpop.f32.mrb[0].mxu0
        %v1341 = vadd.f32 0.0, %v1340
        %v1342 = vpop.f32.mrb[0].mxu0
        %1343 = vmatprep.mubr.f32.mxu0 0.0
        %1344 = vmatmul.mubr.f32.gmra.mrb[0].mxu0 %v1268
        %v1345 = vpop.f32.mrb[0].mxu0
        %v1346 = vadd.f32 0.0, %v1345
        %v1347 = vpop.f32.mrb[0].mxu0
        %1348 = vmatprep.mubr.f32.mxu0 0.0
        %1349 = vmatmul.mubr.f32.gmra.mrb[0].mxu0 %v1270
        %v1350 = vpop.f32.mrb[0].mxu0
        %v1351 = vadd.f32 0.0, %v1350
        %v1352 = vpop.f32.mrb[0].mxu0
        %1353 = vmatprep.mubr.f32.mxu0 0.0
        %1354 = vmatmul.mubr.f32.gmra.mrb[0].mxu0 %v1272
        %v1355 = vpop.f32.mrb[0].mxu0
        %v1356 = vadd.f32 0.0, %v1355
        %v1357 = vpop.f32.mrb[0].mxu0
        %1358 = vdwg.mxu0
        %1359 = vrot.lane.b32.xlu0 %v1156, 112
        %v1360 = vpop.permute.xlu0 %1359
        %1361 = vrot.lane.b32.xlu0 %v1157, 112
        %v1362 = vpop.permute.xlu0 %1361
        %1363 = vrot.lane.b32.xlu0 %v1158, 112
        %v1364 = vpop.permute.xlu0 %1363
        %1365 = vrot.lane.b32.xlu0 %v1159, 112
        %v1366 = vpop.permute.xlu0 %1365
        %v1367 = vsel %vm1024, %v1360, 0
        %v1369 = vsel %vm1024, %v1362, 0
        %v1371 = vsel %vm1024, %v1364, 0
        %v1373 = vsel %vm1024, %v1366, 0
        %1375 = vmatprep.subr.mxu0 0.0
        %1376 = vmatpush1.msra.mxu0 %v1160
        %1377 = vmatprep.subr.mxu0 0.0
        %1378 = vmatpush1.msra.mxu0 0.0
        %1379 = vmatprep.subr.mxu0 0.0
        %1380 = vmatpush1.msra.mxu0 0.0
        %1381 = vmatprep.subr.mxu0 0.0
        %1382 = vmatpush1.msra.mxu0 0.0
        %1383 = vmatprep.subr.mxu0 0.0
        %1384 = vmatpush1.msra.mxu0 0.0
        %1385 = vmatprep.subr.mxu0 0.0
        %1386 = vmatpush1.msra.mxu0 0.0
        %1387 = vmatprep.subr.mxu0 0.0
        %1388 = vmatpush1.msra.mxu0 0.0
        %1389 = vmatprep.subr.mxu0 0.0
        %1390 = vmatpush1.msra.mxu0 0.0
        %1391 = vmatprep.subr.mxu0 0.0
        %1392 = vmatpush1.msra.mxu0 0.0
        %1393 = vmatprep.subr.mxu0 0.0
        %1394 = vmatpush1.msra.mxu0 0.0
        %1395 = vmatprep.subr.mxu0 0.0
        %1396 = vmatpush1.msra.mxu0 0.0
        %1397 = vmatprep.subr.mxu0 0.0
        %1398 = vmatpush1.msra.mxu0 0.0
        %1399 = vmatprep.subr.mxu0 0.0
        %1400 = vmatpush1.msra.mxu0 0.0
        %1401 = vmatprep.subr.mxu0 0.0
        %1402 = vmatpush1.msra.mxu0 0.0
        %1403 = vmatprep.subr.mxu0 0.0
        %1404 = vmatpush1.msra.mxu0 0.0
        %1405 = vmatprep.subr.mxu0 0.0
        %1406 = vmatpush1.msra.mxu0 0.0
        %1407 = vmatprep.subr.mxu0 0.0
        %1408 = vmatpush1.msra.mxu0 0.0
        %1409 = vmatprep.subr.mxu0 0.0
        %1410 = vmatpush1.msra.mxu0 0.0
        %1411 = vmatprep.subr.mxu0 0.0
        %1412 = vmatpush1.msra.mxu0 0.0
        %1413 = vmatprep.subr.mxu0 0.0
        %1414 = vmatpush1.msra.mxu0 0.0
        %1415 = vmatprep.subr.mxu0 0.0
        %1416 = vmatpush1.msra.mxu0 0.0
        %1417 = vmatprep.subr.mxu0 0.0
        %1418 = vmatpush1.msra.mxu0 0.0
        %1419 = vmatprep.subr.mxu0 0.0
        %1420 = vmatpush1.msra.mxu0 0.0
        %1421 = vmatprep.subr.mxu0 0.0
        %1422 = vmatpush1.msra.mxu0 0.0
        %1423 = vmatprep.subr.mxu0 0.0
        %1424 = vmatpush1.msra.mxu0 0.0
        %1425 = vmatprep.subr.mxu0 0.0
        %1426 = vmatpush1.msra.mxu0 0.0
        %1427 = vmatprep.subr.mxu0 0.0
        %1428 = vmatpush1.msra.mxu0 0.0
        %1429 = vmatprep.subr.mxu0 0.0
        %1430 = vmatpush1.msra.mxu0 0.0
        %1431 = vmatprep.subr.mxu0 0.0
        %1432 = vmatpush1.msra.mxu0 0.0
        %1433 = vmatprep.subr.mxu0 0.0
        %1434 = vmatpush1.msra.mxu0 0.0
        %1435 = vmatprep.subr.mxu0 0.0
        %1436 = vmatpush1.msra.mxu0 0.0
        %1437 = vmatprep.subr.mxu0 0.0
        %1438 = vmatpush1.msra.mxu0 0.0
        %1439 = vmatprep.mubr.f32.mxu0 0.0
        %1440 = vmatmul.mubr.f32.gmra.mrb[0].mxu0 %v1367
        %v1441 = vpop.f32.mrb[0].mxu0
        %v1442 = vadd.f32 0.0, %v1441
        %v1443 = vpop.f32.mrb[0].mxu0
        %1444 = vmatprep.mubr.f32.mxu0 0.0
        %1445 = vmatmul.mubr.f32.gmra.mrb[0].mxu0 %v1369
        %v1446 = vpop.f32.mrb[0].mxu0
        %v1447 = vadd.f32 0.0, %v1446
        %v1448 = vpop.f32.mrb[0].mxu0
        %1449 = vmatprep.mubr.f32.mxu0 0.0
        %1450 = vmatmul.mubr.f32.gmra.mrb[0].mxu0 %v1371
        %v1451 = vpop.f32.mrb[0].mxu0
        %v1452 = vadd.f32 0.0, %v1451
        %v1453 = vpop.f32.mrb[0].mxu0
        %1454 = vmatprep.mubr.f32.mxu0 0.0
        %1455 = vmatmul.mubr.f32.gmra.mrb[0].mxu0 %v1373
        %v1456 = vpop.f32.mrb[0].mxu0
        %v1457 = vadd.f32 0.0, %v1456
        %v1458 = vpop.f32.mrb[0].mxu0
        %1459 = vdwg.mxu0
        %1460 = vrot.lane.b32.xlu0 %v1156, 104
        %v1461 = vpop.permute.xlu0 %1460
        %1462 = vrot.lane.b32.xlu0 %v1157, 104
        %v1463 = vpop.permute.xlu0 %1462
        %1464 = vrot.lane.b32.xlu0 %v1158, 104
        %v1465 = vpop.permute.xlu0 %1464
        %1466 = vrot.lane.b32.xlu0 %v1159, 104
        %v1467 = vpop.permute.xlu0 %1466
        %v1468 = vsel %vm1024, %v1461, 0
        %v1470 = vsel %vm1024, %v1463, 0
        %v1472 = vsel %vm1024, %v1465, 0
        %v1474 = vsel %vm1024, %v1467, 0
        %1476 = vmatprep.subr.mxu0 0.0
        %1477 = vmatpush1.msra.mxu0 %v1160
        %1478 = vmatprep.subr.mxu0 0.0
        %1479 = vmatpush1.msra.mxu0 0.0
        %1480 = vmatprep.subr.mxu0 0.0
        %1481 = vmatpush1.msra.mxu0 0.0
        %1482 = vmatprep.subr.mxu0 0.0
        %1483 = vmatpush1.msra.mxu0 0.0
        %1484 = vmatprep.subr.mxu0 0.0
        %1485 = vmatpush1.msra.mxu0 0.0
        %1486 = vmatprep.subr.mxu0 0.0
        %1487 = vmatpush1.msra.mxu0 0.0
        %1488 = vmatprep.subr.mxu0 0.0
        %1489 = vmatpush1.msra.mxu0 0.0
        %1490 = vmatprep.subr.mxu0 0.0
        %1491 = vmatpush1.msra.mxu0 0.0
        %1492 = vmatprep.subr.mxu0 0.0
        %1493 = vmatpush1.msra.mxu0 0.0
        %1494 = vmatprep.subr.mxu0 0.0
        %1495 = vmatpush1.msra.mxu0 0.0
        %1496 = vmatprep.subr.mxu0 0.0
        %1497 = vmatpush1.msra.mxu0 0.0
        %1498 = vmatprep.subr.mxu0 0.0
        %1499 = vmatpush1.msra.mxu0 0.0
        %1500 = vmatprep.subr.mxu0 0.0
        %1501 = vmatpush1.msra.mxu0 0.0
        %1502 = vmatprep.subr.mxu0 0.0
        %1503 = vmatpush1.msra.mxu0 0.0
        %1504 = vmatprep.subr.mxu0 0.0
        %1505 = vmatpush1.msra.mxu0 0.0
        %1506 = vmatprep.subr.mxu0 0.0
        %1507 = vmatpush1.msra.mxu0 0.0
        %1508 = vmatprep.subr.mxu0 0.0
        %1509 = vmatpush1.msra.mxu0 0.0
        %1510 = vmatprep.subr.mxu0 0.0
        %1511 = vmatpush1.msra.mxu0 0.0
        %1512 = vmatprep.subr.mxu0 0.0
        %1513 = vmatpush1.msra.mxu0 0.0
        %1514 = vmatprep.subr.mxu0 0.0
        %1515 = vmatpush1.msra.mxu0 0.0
        %1516 = vmatprep.subr.mxu0 0.0
        %1517 = vmatpush1.msra.mxu0 0.0
        %1518 = vmatprep.subr.mxu0 0.0
        %1519 = vmatpush1.msra.mxu0 0.0
        %1520 = vmatprep.subr.mxu0 0.0
        %1521 = vmatpush1.msra.mxu0 0.0
        %1522 = vmatprep.subr.mxu0 0.0
        %1523 = vmatpush1.msra.mxu0 0.0
        %1524 = vmatprep.subr.mxu0 0.0
        %1525 = vmatpush1.msra.mxu0 0.0
        %1526 = vmatprep.subr.mxu0 0.0
        %1527 = vmatpush1.msra.mxu0 0.0
        %1528 = vmatprep.subr.mxu0 0.0
        %1529 = vmatpush1.msra.mxu0 0.0
        %1530 = vmatprep.subr.mxu0 0.0
        %1531 = vmatpush1.msra.mxu0 0.0
        %1532 = vmatprep.subr.mxu0 0.0
        %1533 = vmatpush1.msra.mxu0 0.0
        %1534 = vmatprep.subr.mxu0 0.0
        %1535 = vmatpush1.msra.mxu0 0.0
        %1536 = vmatprep.subr.mxu0 0.0
        %1537 = vmatpush1.msra.mxu0 0.0
        %1538 = vmatprep.subr.mxu0 0.0
        %1539 = vmatpush1.msra.mxu0 0.0
        %1540 = vmatprep.mubr.f32.mxu0 0.0
        %1541 = vmatmul.mubr.f32.gmra.mrb[0].mxu0 %v1468
        %v1542 = vpop.f32.mrb[0].mxu0
        %v1543 = vadd.f32 0.0, %v1542
        %v1544 = vpop.f32.mrb[0].mxu0
        %1545 = vmatprep.mubr.f32.mxu0 0.0
        %1546 = vmatmul.mubr.f32.gmra.mrb[0].mxu0 %v1470
        %v1547 = vpop.f32.mrb[0].mxu0
        %v1548 = vadd.f32 0.0, %v1547
        %v1549 = vpop.f32.mrb[0].mxu0
        %1550 = vmatprep.mubr.f32.mxu0 0.0
        %1551 = vmatmul.mubr.f32.gmra.mrb[0].mxu0 %v1472
        %v1552 = vpop.f32.mrb[0].mxu0
        %v1553 = vadd.f32 0.0, %v1552
        %v1554 = vpop.f32.mrb[0].mxu0
        %1555 = vmatprep.mubr.f32.mxu0 0.0
        %1556 = vmatmul.mubr.f32.gmra.mrb[0].mxu0 %v1474
        %v1557 = vpop.f32.mrb[0].mxu0
        %v1558 = vadd.f32 0.0, %v1557
        %v1559 = vpop.f32.mrb[0].mxu0
        %1560 = vdwg.mxu0
        %1561 = vrot.lane.b32.xlu0 %v1156, 96
        %v1562 = vpop.permute.xlu0 %1561
        %1563 = vrot.lane.b32.xlu0 %v1157, 96
        %v1564 = vpop.permute.xlu0 %1563
        %1565 = vrot.lane.b32.xlu0 %v1158, 96
        %v1566 = vpop.permute.xlu0 %1565
        %1567 = vrot.lane.b32.xlu0 %v1159, 96
        %v1568 = vpop.permute.xlu0 %1567
        %v1569 = vsel %vm1024, %v1562, 0
        %v1571 = vsel %vm1024, %v1564, 0
        %v1573 = vsel %vm1024, %v1566, 0
        %v1575 = vsel %vm1024, %v1568, 0
        %1577 = vmatprep.subr.mxu0 0.0
        %1578 = vmatpush1.msra.mxu0 %v1160
        %1579 = vmatprep.subr.mxu0 0.0
        %1580 = vmatpush1.msra.mxu0 0.0
        %1581 = vmatprep.subr.mxu0 0.0
        %1582 = vmatpush1.msra.mxu0 0.0
        %1583 = vmatprep.subr.mxu0 0.0
        %1584 = vmatpush1.msra.mxu0 0.0
        %1585 = vmatprep.subr.mxu0 0.0
        %1586 = vmatpush1.msra.mxu0 0.0
        %1587 = vmatprep.subr.mxu0 0.0
        %1588 = vmatpush1.msra.mxu0 0.0
        %1589 = vmatprep.subr.mxu0 0.0
        %1590 = vmatpush1.msra.mxu0 0.0
        %1591 = vmatprep.subr.mxu0 0.0
        %1592 = vmatpush1.msra.mxu0 0.0
        %1593 = vmatprep.subr.mxu0 0.0
        %1594 = vmatpush1.msra.mxu0 0.0
        %1595 = vmatprep.subr.mxu0 0.0
        %1596 = vmatpush1.msra.mxu0 0.0
        %1597 = vmatprep.subr.mxu0 0.0
        %1598 = vmatpush1.msra.mxu0 0.0
        %1599 = vmatprep.subr.mxu0 0.0
        %1600 = vmatpush1.msra.mxu0 0.0
        %1601 = vmatprep.subr.mxu0 0.0
        %1602 = vmatpush1.msra.mxu0 0.0
        %1603 = vmatprep.subr.mxu0 0.0
        %1604 = vmatpush1.msra.mxu0 0.0
        %1605 = vmatprep.subr.mxu0 0.0
        %1606 = vmatpush1.msra.mxu0 0.0
        %1607 = vmatprep.subr.mxu0 0.0
        %1608 = vmatpush1.msra.mxu0 0.0
        %1609 = vmatprep.subr.mxu0 0.0
        %1610 = vmatpush1.msra.mxu0 0.0
        %1611 = vmatprep.subr.mxu0 0.0
        %1612 = vmatpush1.msra.mxu0 0.0
        %1613 = vmatprep.subr.mxu0 0.0
        %1614 = vmatpush1.msra.mxu0 0.0
        %1615 = vmatprep.subr.mxu0 0.0
        %1616 = vmatpush1.msra.mxu0 0.0
        %1617 = vmatprep.subr.mxu0 0.0
        %1618 = vmatpush1.msra.mxu0 0.0
        %1619 = vmatprep.subr.mxu0 0.0
        %1620 = vmatpush1.msra.mxu0 0.0
        %1621 = vmatprep.subr.mxu0 0.0
        %1622 = vmatpush1.msra.mxu0 0.0
        %1623 = vmatprep.subr.mxu0 0.0
        %1624 = vmatpush1.msra.mxu0 0.0
        %1625 = vmatprep.subr.mxu0 0.0
        %1626 = vmatpush1.msra.mxu0 0.0
        %1627 = vmatprep.subr.mxu0 0.0
        %1628 = vmatpush1.msra.mxu0 0.0
        %1629 = vmatprep.subr.mxu0 0.0
        %1630 = vmatpush1.msra.mxu0 0.0
        %1631 = vmatprep.subr.mxu0 0.0
        %1632 = vmatpush1.msra.mxu0 0.0
        %1633 = vmatprep.subr.mxu0 0.0
        %1634 = vmatpush1.msra.mxu0 0.0
        %1635 = vmatprep.subr.mxu0 0.0
        %1636 = vmatpush1.msra.mxu0 0.0
        %1637 = vmatprep.subr.mxu0 0.0
        %1638 = vmatpush1.msra.mxu0 0.0
        %1639 = vmatprep.subr.mxu0 0.0
        %1640 = vmatpush1.msra.mxu0 0.0
        %1641 = vmatprep.mubr.f32.mxu0 0.0
        %1642 = vmatmul.mubr.f32.gmra.mrb[0].mxu0 %v1569
        %v1643 = vpop.f32.mrb[0].mxu0
        %v1644 = vadd.f32 0.0, %v1643
        %v1645 = vpop.f32.mrb[0].mxu0
        %1646 = vmatprep.mubr.f32.mxu0 0.0
        %1647 = vmatmul.mubr.f32.gmra.mrb[0].mxu0 %v1571
        %v1648 = vpop.f32.mrb[0].mxu0
        %v1649 = vadd.f32 0.0, %v1648
        %v1650 = vpop.f32.mrb[0].mxu0
        %1651 = vmatprep.mubr.f32.mxu0 0.0
        %1652 = vmatmul.mubr.f32.gmra.mrb[0].mxu0 %v1573
        %v1653 = vpop.f32.mrb[0].mxu0
        %v1654 = vadd.f32 0.0, %v1653
        %v1655 = vpop.f32.mrb[0].mxu0
        %1656 = vmatprep.mubr.f32.mxu0 0.0
        %1657 = vmatmul.mubr.f32.gmra.mrb[0].mxu0 %v1575
        %v1658 = vpop.f32.mrb[0].mxu0
        %v1659 = vadd.f32 0.0, %v1658
        %v1660 = vpop.f32.mrb[0].mxu0
        %1661 = vdwg.mxu0
        %1662 = vrot.lane.b32.xlu0 %v1156, 88
        %v1663 = vpop.permute.xlu0 %1662
        %1664 = vrot.lane.b32.xlu0 %v1157, 88
        %v1665 = vpop.permute.xlu0 %1664
        %1666 = vrot.lane.b32.xlu0 %v1158, 88
        %v1667 = vpop.permute.xlu0 %1666
        %1668 = vrot.lane.b32.xlu0 %v1159, 88
        %v1669 = vpop.permute.xlu0 %1668
        %v1670 = vsel %vm1024, %v1663, 0
        %v1672 = vsel %vm1024, %v1665, 0
        %v1674 = vsel %vm1024, %v1667, 0
        %v1676 = vsel %vm1024, %v1669, 0
        %1678 = vmatprep.subr.mxu0 0.0
        %1679 = vmatpush1.msra.mxu0 %v1160
        %1680 = vmatprep.subr.mxu0 0.0
        %1681 = vmatpush1.msra.mxu0 0.0
        %1682 = vmatprep.subr.mxu0 0.0
        %1683 = vmatpush1.msra.mxu0 0.0
        %1684 = vmatprep.subr.mxu0 0.0
        %1685 = vmatpush1.msra.mxu0 0.0
        %1686 = vmatprep.subr.mxu0 0.0
        %1687 = vmatpush1.msra.mxu0 0.0
        %1688 = vmatprep.subr.mxu0 0.0
        %1689 = vmatpush1.msra.mxu0 0.0
        %1690 = vmatprep.subr.mxu0 0.0
        %1691 = vmatpush1.msra.mxu0 0.0
        %1692 = vmatprep.subr.mxu0 0.0
        %1693 = vmatpush1.msra.mxu0 0.0
        %1694 = vmatprep.subr.mxu0 0.0
        %1695 = vmatpush1.msra.mxu0 0.0
        %1696 = vmatprep.subr.mxu0 0.0
        %1697 = vmatpush1.msra.mxu0 0.0
        %1698 = vmatprep.subr.mxu0 0.0
        %1699 = vmatpush1.msra.mxu0 0.0
        %1700 = vmatprep.subr.mxu0 0.0
        %1701 = vmatpush1.msra.mxu0 0.0
        %1702 = vmatprep.subr.mxu0 0.0
        %1703 = vmatpush1.msra.mxu0 0.0
        %1704 = vmatprep.subr.mxu0 0.0
        %1705 = vmatpush1.msra.mxu0 0.0
        %1706 = vmatprep.subr.mxu0 0.0
        %1707 = vmatpush1.msra.mxu0 0.0
        %1708 = vmatprep.subr.mxu0 0.0
        %1709 = vmatpush1.msra.mxu0 0.0
        %1710 = vmatprep.subr.mxu0 0.0
        %1711 = vmatpush1.msra.mxu0 0.0
        %1712 = vmatprep.subr.mxu0 0.0
        %1713 = vmatpush1.msra.mxu0 0.0
        %1714 = vmatprep.subr.mxu0 0.0
        %1715 = vmatpush1.msra.mxu0 0.0
        %1716 = vmatprep.subr.mxu0 0.0
        %1717 = vmatpush1.msra.mxu0 0.0
        %1718 = vmatprep.subr.mxu0 0.0
        %1719 = vmatpush1.msra.mxu0 0.0
        %1720 = vmatprep.subr.mxu0 0.0
        %1721 = vmatpush1.msra.mxu0 0.0
        %1722 = vmatprep.subr.mxu0 0.0
        %1723 = vmatpush1.msra.mxu0 0.0
        %1724 = vmatprep.subr.mxu0 0.0
        %1725 = vmatpush1.msra.mxu0 0.0
        %1726 = vmatprep.subr.mxu0 0.0
        %1727 = vmatpush1.msra.mxu0 0.0
        %1728 = vmatprep.subr.mxu0 0.0
        %1729 = vmatpush1.msra.mxu0 0.0
        %1730 = vmatprep.subr.mxu0 0.0
        %1731 = vmatpush1.msra.mxu0 0.0
        %1732 = vmatprep.subr.mxu0 0.0
        %1733 = vmatpush1.msra.mxu0 0.0
        %1734 = vmatprep.subr.mxu0 0.0
        %1735 = vmatpush1.msra.mxu0 0.0
        %1736 = vmatprep.subr.mxu0 0.0
        %1737 = vmatpush1.msra.mxu0 0.0
        %1738 = vmatprep.subr.mxu0 0.0
        %1739 = vmatpush1.msra.mxu0 0.0
        %1740 = vmatprep.subr.mxu0 0.0
        %1741 = vmatpush1.msra.mxu0 0.0
        %1742 = vmatprep.mubr.f32.mxu0 0.0
        %1743 = vmatmul.mubr.f32.gmra.mrb[0].mxu0 %v1670
        %v1744 = vpop.f32.mrb[0].mxu0
        %v1745 = vadd.f32 0.0, %v1744
        %v1746 = vpop.f32.mrb[0].mxu0
        %1747 = vmatprep.mubr.f32.mxu0 0.0
        %1748 = vmatmul.mubr.f32.gmra.mrb[0].mxu0 %v1672
        %v1749 = vpop.f32.mrb[0].mxu0
        %v1750 = vadd.f32 0.0, %v1749
        %v1751 = vpop.f32.mrb[0].mxu0
        %1752 = vmatprep.mubr.f32.mxu0 0.0
        %1753 = vmatmul.mubr.f32.gmra.mrb[0].mxu0 %v1674
        %v1754 = vpop.f32.mrb[0].mxu0
        %v1755 = vadd.f32 0.0, %v1754
        %v1756 = vpop.f32.mrb[0].mxu0
        %1757 = vmatprep.mubr.f32.mxu0 0.0
        %1758 = vmatmul.mubr.f32.gmra.mrb[0].mxu0 %v1676
        %v1759 = vpop.f32.mrb[0].mxu0
        %v1760 = vadd.f32 0.0, %v1759
        %v1761 = vpop.f32.mrb[0].mxu0
        %1762 = vdwg.mxu0
        %1763 = vrot.lane.b32.xlu0 %v1156, 80
        %v1764 = vpop.permute.xlu0 %1763
        %1765 = vrot.lane.b32.xlu0 %v1157, 80
        %v1766 = vpop.permute.xlu0 %1765
        %1767 = vrot.lane.b32.xlu0 %v1158, 80
        %v1768 = vpop.permute.xlu0 %1767
        %1769 = vrot.lane.b32.xlu0 %v1159, 80
        %v1770 = vpop.permute.xlu0 %1769
        %v1771 = vsel %vm1024, %v1764, 0
        %v1773 = vsel %vm1024, %v1766, 0
        %v1775 = vsel %vm1024, %v1768, 0
        %v1777 = vsel %vm1024, %v1770, 0
        %1779 = vmatprep.subr.mxu0 0.0
        %1780 = vmatpush1.msra.mxu0 %v1160
        %1781 = vmatprep.subr.mxu0 0.0
        %1782 = vmatpush1.msra.mxu0 0.0
        %1783 = vmatprep.subr.mxu0 0.0
        %1784 = vmatpush1.msra.mxu0 0.0
        %1785 = vmatprep.subr.mxu0 0.0
        %1786 = vmatpush1.msra.mxu0 0.0
        %1787 = vmatprep.subr.mxu0 0.0
        %1788 = vmatpush1.msra.mxu0 0.0
        %1789 = vmatprep.subr.mxu0 0.0
        %1790 = vmatpush1.msra.mxu0 0.0
        %1791 = vmatprep.subr.mxu0 0.0
        %1792 = vmatpush1.msra.mxu0 0.0
        %1793 = vmatprep.subr.mxu0 0.0
        %1794 = vmatpush1.msra.mxu0 0.0
        %1795 = vmatprep.subr.mxu0 0.0
        %1796 = vmatpush1.msra.mxu0 0.0
        %1797 = vmatprep.subr.mxu0 0.0
        %1798 = vmatpush1.msra.mxu0 0.0
        %1799 = vmatprep.subr.mxu0 0.0
        %1800 = vmatpush1.msra.mxu0 0.0
        %1801 = vmatprep.subr.mxu0 0.0
        %1802 = vmatpush1.msra.mxu0 0.0
        %1803 = vmatprep.subr.mxu0 0.0
        %1804 = vmatpush1.msra.mxu0 0.0
        %1805 = vmatprep.subr.mxu0 0.0
        %1806 = vmatpush1.msra.mxu0 0.0
        %1807 = vmatprep.subr.mxu0 0.0
        %1808 = vmatpush1.msra.mxu0 0.0
        %1809 = vmatprep.subr.mxu0 0.0
        %1810 = vmatpush1.msra.mxu0 0.0
        %1811 = vmatprep.subr.mxu0 0.0
        %1812 = vmatpush1.msra.mxu0 0.0
        %1813 = vmatprep.subr.mxu0 0.0
        %1814 = vmatpush1.msra.mxu0 0.0
        %1815 = vmatprep.subr.mxu0 0.0
        %1816 = vmatpush1.msra.mxu0 0.0
        %1817 = vmatprep.subr.mxu0 0.0
        %1818 = vmatpush1.msra.mxu0 0.0
        %1819 = vmatprep.subr.mxu0 0.0
        %1820 = vmatpush1.msra.mxu0 0.0
        %1821 = vmatprep.subr.mxu0 0.0
        %1822 = vmatpush1.msra.mxu0 0.0
        %1823 = vmatprep.subr.mxu0 0.0
        %1824 = vmatpush1.msra.mxu0 0.0
        %1825 = vmatprep.subr.mxu0 0.0
        %1826 = vmatpush1.msra.mxu0 0.0
        %1827 = vmatprep.subr.mxu0 0.0
        %1828 = vmatpush1.msra.mxu0 0.0
        %1829 = vmatprep.subr.mxu0 0.0
        %1830 = vmatpush1.msra.mxu0 0.0
        %1831 = vmatprep.subr.mxu0 0.0
        %1832 = vmatpush1.msra.mxu0 0.0
        %1833 = vmatprep.subr.mxu0 0.0
        %1834 = vmatpush1.msra.mxu0 0.0
        %1835 = vmatprep.subr.mxu0 0.0
        %1836 = vmatpush1.msra.mxu0 0.0
        %1837 = vmatprep.subr.mxu0 0.0
        %1838 = vmatpush1.msra.mxu0 0.0
        %1839 = vmatprep.subr.mxu0 0.0
        %1840 = vmatpush1.msra.mxu0 0.0
        %1841 = vmatprep.subr.mxu0 0.0
        %1842 = vmatpush1.msra.mxu0 0.0
        %1843 = vmatprep.mubr.f32.mxu0 0.0
        %1844 = vmatmul.mubr.f32.gmra.mrb[0].mxu0 %v1771
        %v1845 = vpop.f32.mrb[0].mxu0
        %v1846 = vadd.f32 0.0, %v1845
        %v1847 = vpop.f32.mrb[0].mxu0
        %1848 = vmatprep.mubr.f32.mxu0 0.0
        %1849 = vmatmul.mubr.f32.gmra.mrb[0].mxu0 %v1773
        %v1850 = vpop.f32.mrb[0].mxu0
        %v1851 = vadd.f32 0.0, %v1850
        %v1852 = vpop.f32.mrb[0].mxu0
        %1853 = vmatprep.mubr.f32.mxu0 0.0
        %1854 = vmatmul.mubr.f32.gmra.mrb[0].mxu0 %v1775
        %v1855 = vpop.f32.mrb[0].mxu0
        %v1856 = vadd.f32 0.0, %v1855
        %v1857 = vpop.f32.mrb[0].mxu0
        %1858 = vmatprep.mubr.f32.mxu0 0.0
        %1859 = vmatmul.mubr.f32.gmra.mrb[0].mxu0 %v1777
        %v1860 = vpop.f32.mrb[0].mxu0
        %v1861 = vadd.f32 0.0, %v1860
        %v1862 = vpop.f32.mrb[0].mxu0
        %1863 = vdwg.mxu0
        %1864 = vrot.lane.b32.xlu0 %v1156, 72
        %v1865 = vpop.permute.xlu0 %1864
        %1866 = vrot.lane.b32.xlu0 %v1157, 72
        %v1867 = vpop.permute.xlu0 %1866
        %1868 = vrot.lane.b32.xlu0 %v1158, 72
        %v1869 = vpop.permute.xlu0 %1868
        %1870 = vrot.lane.b32.xlu0 %v1159, 72
        %v1871 = vpop.permute.xlu0 %1870
        %v1872 = vsel %vm1024, %v1865, 0
        %v1874 = vsel %vm1024, %v1867, 0
        %v1876 = vsel %vm1024, %v1869, 0
        %v1878 = vsel %vm1024, %v1871, 0
        %1880 = vmatprep.subr.mxu0 0.0
        %1881 = vmatpush1.msra.mxu0 %v1160
        %1882 = vmatprep.subr.mxu0 0.0
        %1883 = vmatpush1.msra.mxu0 0.0
        %1884 = vmatprep.subr.mxu0 0.0
        %1885 = vmatpush1.msra.mxu0 0.0
        %1886 = vmatprep.subr.mxu0 0.0
        %1887 = vmatpush1.msra.mxu0 0.0
        %1888 = vmatprep.subr.mxu0 0.0
        %1889 = vmatpush1.msra.mxu0 0.0
        %1890 = vmatprep.subr.mxu0 0.0
        %1891 = vmatpush1.msra.mxu0 0.0
        %1892 = vmatprep.subr.mxu0 0.0
        %1893 = vmatpush1.msra.mxu0 0.0
        %1894 = vmatprep.subr.mxu0 0.0
        %1895 = vmatpush1.msra.mxu0 0.0
        %1896 = vmatprep.subr.mxu0 0.0
        %1897 = vmatpush1.msra.mxu0 0.0
        %1898 = vmatprep.subr.mxu0 0.0
        %1899 = vmatpush1.msra.mxu0 0.0
        %1900 = vmatprep.subr.mxu0 0.0
        %1901 = vmatpush1.msra.mxu0 0.0
        %1902 = vmatprep.subr.mxu0 0.0
        %1903 = vmatpush1.msra.mxu0 0.0
        %1904 = vmatprep.subr.mxu0 0.0
        %1905 = vmatpush1.msra.mxu0 0.0
        %1906 = vmatprep.subr.mxu0 0.0
        %1907 = vmatpush1.msra.mxu0 0.0
        %1908 = vmatprep.subr.mxu0 0.0
        %1909 = vmatpush1.msra.mxu0 0.0
        %1910 = vmatprep.subr.mxu0 0.0
        %1911 = vmatpush1.msra.mxu0 0.0
        %1912 = vmatprep.subr.mxu0 0.0
        %1913 = vmatpush1.msra.mxu0 0.0
        %1914 = vmatprep.subr.mxu0 0.0
        %1915 = vmatpush1.msra.mxu0 0.0
        %1916 = vmatprep.subr.mxu0 0.0
        %1917 = vmatpush1.msra.mxu0 0.0
        %1918 = vmatprep.subr.mxu0 0.0
        %1919 = vmatpush1.msra.mxu0 0.0
        %1920 = vmatprep.subr.mxu0 0.0
        %1921 = vmatpush1.msra.mxu0 0.0
        %1922 = vmatprep.subr.mxu0 0.0
        %1923 = vmatpush1.msra.mxu0 0.0
        %1924 = vmatprep.subr.mxu0 0.0
        %1925 = vmatpush1.msra.mxu0 0.0
        %1926 = vmatprep.subr.mxu0 0.0
        %1927 = vmatpush1.msra.mxu0 0.0
        %1928 = vmatprep.subr.mxu0 0.0
        %1929 = vmatpush1.msra.mxu0 0.0
        %1930 = vmatprep.subr.mxu0 0.0
        %1931 = vmatpush1.msra.mxu0 0.0
        %1932 = vmatprep.subr.mxu0 0.0
        %1933 = vmatpush1.msra.mxu0 0.0
        %1934 = vmatprep.subr.mxu0 0.0
        %1935 = vmatpush1.msra.mxu0 0.0
        %1936 = vmatprep.subr.mxu0 0.0
        %1937 = vmatpush1.msra.mxu0 0.0
        %1938 = vmatprep.subr.mxu0 0.0
        %1939 = vmatpush1.msra.mxu0 0.0
        %1940 = vmatprep.subr.mxu0 0.0
        %1941 = vmatpush1.msra.mxu0 0.0
        %1942 = vmatprep.subr.mxu0 0.0
        %1943 = vmatpush1.msra.mxu0 0.0
        %1944 = vmatprep.mubr.f32.mxu0 0.0
        %1945 = vmatmul.mubr.f32.gmra.mrb[0].mxu0 %v1872
        %v1946 = vpop.f32.mrb[0].mxu0
        %v1947 = vadd.f32 0.0, %v1946
        %v1948 = vpop.f32.mrb[0].mxu0
        %1949 = vmatprep.mubr.f32.mxu0 0.0
        %1950 = vmatmul.mubr.f32.gmra.mrb[0].mxu0 %v1874
        %v1951 = vpop.f32.mrb[0].mxu0
        %v1952 = vadd.f32 0.0, %v1951
        %v1953 = vpop.f32.mrb[0].mxu0
        %1954 = vmatprep.mubr.f32.mxu0 0.0
        %1955 = vmatmul.mubr.f32.gmra.mrb[0].mxu0 %v1876
        %v1956 = vpop.f32.mrb[0].mxu0
        %v1957 = vadd.f32 0.0, %v1956
        %v1958 = vpop.f32.mrb[0].mxu0
        %1959 = vmatprep.mubr.f32.mxu0 0.0
        %1960 = vmatmul.mubr.f32.gmra.mrb[0].mxu0 %v1878
        %v1961 = vpop.f32.mrb[0].mxu0
        %v1962 = vadd.f32 0.0, %v1961
        %v1963 = vpop.f32.mrb[0].mxu0
        %1964 = vdwg.mxu0
        %1969 = vrot.lane.b32.xlu0 %v1240, 16
        %v1970 = vpop.permute.xlu0 %1969
        %1971 = vrot.lane.b32.xlu0 %v1245, 16
        %v1972 = vpop.permute.xlu0 %1971
        %1973 = vrot.lane.b32.xlu0 %v1250, 16
        %v1974 = vpop.permute.xlu0 %1973
        %1975 = vrot.lane.b32.xlu0 %v1255, 16
        %v1976 = vpop.permute.xlu0 %1975
        %1985 = vrot.lane.b32.xlu0 %v1341, 32
        %v1986 = vpop.permute.xlu0 %1985
        %1987 = vrot.lane.b32.xlu0 %v1346, 32
        %v1988 = vpop.permute.xlu0 %1987
        %1989 = vrot.lane.b32.xlu0 %v1351, 32
        %v1990 = vpop.permute.xlu0 %1989
        %1991 = vrot.lane.b32.xlu0 %v1356, 32
        %v1992 = vpop.permute.xlu0 %1991
        %1997 = vrot.lane.b32.xlu0 %v1341, 48
        %v1998 = vpop.permute.xlu0 %1997
        %1999 = vrot.lane.b32.xlu0 %v1346, 48
        %v2000 = vpop.permute.xlu0 %1999
        %2001 = vrot.lane.b32.xlu0 %v1351, 48
        %v2002 = vpop.permute.xlu0 %2001
        %2003 = vrot.lane.b32.xlu0 %v1356, 48
        %v2004 = vpop.permute.xlu0 %2003
        %2013 = vrot.lane.b32.xlu0 %v1442, 64
        %v2014 = vpop.permute.xlu0 %2013
        %2015 = vrot.lane.b32.xlu0 %v1447, 64
        %v2016 = vpop.permute.xlu0 %2015
        %2017 = vrot.lane.b32.xlu0 %v1452, 64
        %v2018 = vpop.permute.xlu0 %2017
        %2019 = vrot.lane.b32.xlu0 %v1457, 64
        %v2020 = vpop.permute.xlu0 %2019
        %2025 = vrot.lane.b32.xlu0 %v1442, 80
        %v2026 = vpop.permute.xlu0 %2025
        %2027 = vrot.lane.b32.xlu0 %v1447, 80
        %v2028 = vpop.permute.xlu0 %2027
        %2029 = vrot.lane.b32.xlu0 %v1452, 80
        %v2030 = vpop.permute.xlu0 %2029
        %2031 = vrot.lane.b32.xlu0 %v1457, 80
        %v2032 = vpop.permute.xlu0 %2031
        %2041 = vrot.lane.b32.xlu0 %v1543, 96
        %v2042 = vpop.permute.xlu0 %2041
        %2043 = vrot.lane.b32.xlu0 %v1548, 96
        %v2044 = vpop.permute.xlu0 %2043
        %2045 = vrot.lane.b32.xlu0 %v1553, 96
        %v2046 = vpop.permute.xlu0 %2045
        %2047 = vrot.lane.b32.xlu0 %v1558, 96
        %v2048 = vpop.permute.xlu0 %2047
        %2053 = vrot.lane.b32.xlu0 %v1543, 112
        %v2054 = vpop.permute.xlu0 %2053
        %2055 = vrot.lane.b32.xlu0 %v1548, 112
        %v2056 = vpop.permute.xlu0 %2055
        %2057 = vrot.lane.b32.xlu0 %v1553, 112
        %v2058 = vpop.permute.xlu0 %2057
        %2059 = vrot.lane.b32.xlu0 %v1558, 112
        %v2060 = vpop.permute.xlu0 %2059
        %2069 = vrot.lane.b32.xlu0 %v1644, 16
        %v2070 = vpop.permute.xlu0 %2069
        %2071 = vrot.lane.b32.xlu0 %v1649, 16
        %v2072 = vpop.permute.xlu0 %2071
        %2073 = vrot.lane.b32.xlu0 %v1654, 16
        %v2074 = vpop.permute.xlu0 %2073
        %2075 = vrot.lane.b32.xlu0 %v1659, 16
        %v2076 = vpop.permute.xlu0 %2075
        %2085 = vrot.lane.b32.xlu0 %v1745, 32
        %v2086 = vpop.permute.xlu0 %2085
        %2087 = vrot.lane.b32.xlu0 %v1750, 32
        %v2088 = vpop.permute.xlu0 %2087
        %2089 = vrot.lane.b32.xlu0 %v1755, 32
        %v2090 = vpop.permute.xlu0 %2089
        %2091 = vrot.lane.b32.xlu0 %v1760, 32
        %v2092 = vpop.permute.xlu0 %2091
        %2097 = vrot.lane.b32.xlu0 %v1745, 48
        %v2098 = vpop.permute.xlu0 %2097
        %2099 = vrot.lane.b32.xlu0 %v1750, 48
        %v2100 = vpop.permute.xlu0 %2099
        %2101 = vrot.lane.b32.xlu0 %v1755, 48
        %v2102 = vpop.permute.xlu0 %2101
        %2103 = vrot.lane.b32.xlu0 %v1760, 48
        %v2104 = vpop.permute.xlu0 %2103
        %2113 = vrot.lane.b32.xlu0 %v1846, 64
        %v2114 = vpop.permute.xlu0 %2113
        %2115 = vrot.lane.b32.xlu0 %v1851, 64
        %v2116 = vpop.permute.xlu0 %2115
        %2117 = vrot.lane.b32.xlu0 %v1856, 64
        %v2118 = vpop.permute.xlu0 %2117
        %2119 = vrot.lane.b32.xlu0 %v1861, 64
        %v2120 = vpop.permute.xlu0 %2119
        %2125 = vrot.lane.b32.xlu0 %v1846, 80
        %v2126 = vpop.permute.xlu0 %2125
        %2127 = vrot.lane.b32.xlu0 %v1851, 80
        %v2128 = vpop.permute.xlu0 %2127
        %2129 = vrot.lane.b32.xlu0 %v1856, 80
        %v2130 = vpop.permute.xlu0 %2129
        %2131 = vrot.lane.b32.xlu0 %v1861, 80
        %v2132 = vpop.permute.xlu0 %2131
        %2141 = vrot.lane.b32.xlu0 %v1947, 96
        %v2142 = vpop.permute.xlu0 %2141
        %2143 = vrot.lane.b32.xlu0 %v1952, 96
        %v2144 = vpop.permute.xlu0 %2143
        %2145 = vrot.lane.b32.xlu0 %v1957, 96
        %v2146 = vpop.permute.xlu0 %2145
        %2147 = vrot.lane.b32.xlu0 %v1962, 96
        %v2148 = vpop.permute.xlu0 %2147
        %2153 = vrot.lane.b32.xlu0 %v1947, 112
        %v2154 = vpop.permute.xlu0 %2153
        %2155 = vrot.lane.b32.xlu0 %v1952, 112
        %v2156 = vpop.permute.xlu0 %2155
        %2157 = vrot.lane.b32.xlu0 %v1957, 112
        %v2158 = vpop.permute.xlu0 %2157
        %2159 = vrot.lane.b32.xlu0 %v1962, 112
        %v2160 = vpop.permute.xlu0 %2159
        %v2165 = vsel %vm1029, %v1240, %v1970
        %v2166 = vsel %vm1029, %v1245, %v1972
        %v2167 = vsel %vm1029, %v1250, %v1974
        %v2168 = vsel %vm1029, %v1255, %v1976
        %v2169 = vsel %vm1039, %v2165, %v1986
        %v2170 = vsel %vm1039, %v2166, %v1988
        %v2171 = vsel %vm1039, %v2167, %v1990
        %v2172 = vsel %vm1039, %v2168, %v1992
        %v2173 = vsel %vm1049, %v2169, %v1998
        %v2174 = vsel %vm1049, %v2170, %v2000
        %v2175 = vsel %vm1049, %v2171, %v2002
        %v2176 = vsel %vm1049, %v2172, %v2004
        %vm2177 = vcmask 523264
        %v2178 = vsel %vm2177, %v2173, %v2014
        %v2179 = vsel %vm2177, %v2174, %v2016
        %v2180 = vsel %vm2177, %v2175, %v2018
        %v2181 = vsel %vm2177, %v2176, %v2020
        %vm2182 = vcmask 654336
        %v2183 = vsel %vm2182, %v2178, %v2026
        %v2184 = vsel %vm2182, %v2179, %v2028
        %v2185 = vsel %vm2182, %v2180, %v2030
        %v2186 = vsel %vm2182, %v2181, %v2032
        %vm2187 = vcmask 785408
        %v2188 = vsel %vm2187, %v2183, %v2042
        %v2189 = vsel %vm2187, %v2184, %v2044
        %v2190 = vsel %vm2187, %v2185, %v2046
        %v2191 = vsel %vm2187, %v2186, %v2048
        %vm2192 = vcmask 916480
        %v2193 = vsel %vm2192, %v2188, %v2054
        %v2194 = vsel %vm2192, %v2189, %v2056
        %v2195 = vsel %vm2192, %v2190, %v2058
        %v2196 = vsel %vm2192, %v2191, %v2060
        %v2197 = vsel %vm1029, %v1644, %v2070
        %v2198 = vsel %vm1029, %v1649, %v2072
        %v2199 = vsel %vm1029, %v1654, %v2074
        %v2200 = vsel %vm1029, %v1659, %v2076
        %v2201 = vsel %vm1039, %v2197, %v2086
        %v2202 = vsel %vm1039, %v2198, %v2088
        %v2203 = vsel %vm1039, %v2199, %v2090
        %v2204 = vsel %vm1039, %v2200, %v2092
        %v2205 = vsel %vm1049, %v2201, %v2098
        %v2206 = vsel %vm1049, %v2202, %v2100
        %v2207 = vsel %vm1049, %v2203, %v2102
        %v2208 = vsel %vm1049, %v2204, %v2104
        %v2209 = vsel %vm2177, %v2205, %v2114
        %v2210 = vsel %vm2177, %v2206, %v2116
        %v2211 = vsel %vm2177, %v2207, %v2118
        %v2212 = vsel %vm2177, %v2208, %v2120
        %v2213 = vsel %vm2182, %v2209, %v2126
        %v2214 = vsel %vm2182, %v2210, %v2128
        %v2215 = vsel %vm2182, %v2211, %v2130
        %v2216 = vsel %vm2182, %v2212, %v2132
        %v2217 = vsel %vm2187, %v2213, %v2142
        %v2218 = vsel %vm2187, %v2214, %v2144
        %v2219 = vsel %vm2187, %v2215, %v2146
        %v2220 = vsel %vm2187, %v2216, %v2148
        %v2221 = vsel %vm2192, %v2217, %v2154
        %v2222 = vsel %vm2192, %v2218, %v2156
        %v2223 = vsel %vm2192, %v2219, %v2158
        %v2224 = vsel %vm2192, %v2220, %v2160
        %v2225 = vld [vmem:[%s5] sm:$0xf]
        %v2226 = vld [vmem:[%s5 + $0x4] sm:$0xf]
        %v2227 = vld [vmem:[%s5 + $0x8] sm:$0xf]
        %v2228 = vld [vmem:[%s5 + $0xc] sm:$0xf]
        %v2229 = vld [vmem:[%s418] sm:$0xff]
        %v2230 = vld [vmem:[%s418 + $0x8] sm:$0xff]
        %v2231 = vld [vmem:[%s8] sm:$0xff]
        %v2232 = vld [vmem:[%s8 + $0x8] sm:$0xff]
        %v2233 = vld [vmem:[%s8 + $0x10] sm:$0xff]
        %v2234 = vld [vmem:[%s8 + $0x18] sm:$0xff]
        %2236 = vset.pattern.permute.xlu0 0
        %2237 = vperm.xlu0 %2236, %v2231
        %v2238 = vpop.permute.xlu0 %2237
        %2241 = vset.pattern.permute.xlu0 0
        %2242 = vperm.xlu0 %2241, %v2232
        %v2243 = vpop.permute.xlu0 %2242
        %2246 = vset.pattern.permute.xlu0 0
        %2247 = vperm.xlu0 %2246, %v2233
        %v2248 = vpop.permute.xlu0 %2247
        %2251 = vset.pattern.permute.xlu0 0
        %2252 = vperm.xlu0 %2251, %v2234
        %v2253 = vpop.permute.xlu0 %2252
        %v2259 = vunpack.c.l.b16 %v2225
        %v2260 = vunpack.c.l.b16 %v2226
        %v2261 = vunpack.c.l.b16 %v2227
        %v2262 = vunpack.c.l.b16 %v2228
        %v2263 = vpack.c.b16 %v2260, %v2259
        %v2264 = vpack.c.b16 %v2262, %v2261
        %v2267 = vunpack.c.l.b16 %v2229
        %v2268 = vunpack.c.h.b16 %v2229
        %v2269 = vunpack.c.l.b16 %v2230
        %v2270 = vunpack.c.h.b16 %v2230
        %v2271 = vpack.c.b16 %v2269, %v2267
        %v2272 = vpack.c.b16 %v2270, %v2268
        %v2276 = vsel %vm1029, %v2263, 0
        %v2279 = vsel %vm1029, %v2264, 0
        %2281 = vmatprep.subr.bf16.mxu0 %v2272
        %2282 = vmatpush1.bf16.msra.mxu0 %v2271
        %2283 = vmatprep.subr.bf16.mxu0 0
        %2284 = vmatpush1.bf16.msra.mxu0 0
        %2285 = vmatprep.subr.bf16.mxu0 0
        %2286 = vmatpush1.bf16.msra.mxu0 0
        %2287 = vmatprep.subr.bf16.mxu0 0
        %2288 = vmatpush1.bf16.msra.mxu0 0
        %2289 = vmatprep.subr.bf16.mxu0 0
        %2290 = vmatpush1.bf16.msra.mxu0 0
        %2291 = vmatprep.subr.bf16.mxu0 0
        %2292 = vmatpush1.bf16.msra.mxu0 0
        %2293 = vmatprep.subr.bf16.mxu0 0
        %2294 = vmatpush1.bf16.msra.mxu0 0
        %2295 = vmatprep.subr.bf16.mxu0 0
        %2296 = vmatpush1.bf16.msra.mxu0 0
        %2297 = vmatprep.subr.bf16.mxu0 0
        %2298 = vmatpush1.bf16.msra.mxu0 0
        %2299 = vmatprep.subr.bf16.mxu0 0
        %2300 = vmatpush1.bf16.msra.mxu0 0
        %2301 = vmatprep.subr.bf16.mxu0 0
        %2302 = vmatpush1.bf16.msra.mxu0 0
        %2303 = vmatprep.subr.bf16.mxu0 0
        %2304 = vmatpush1.bf16.msra.mxu0 0
        %2305 = vmatprep.subr.bf16.mxu0 0
        %2306 = vmatpush1.bf16.msra.mxu0 0
        %2307 = vmatprep.subr.bf16.mxu0 0
        %2308 = vmatpush1.bf16.msra.mxu0 0
        %2309 = vmatprep.subr.bf16.mxu0 0
        %2310 = vmatpush1.bf16.msra.mxu0 0
        %2311 = vmatprep.subr.bf16.mxu0 0
        %2312 = vmatpush1.bf16.msra.mxu0 0
        %2313 = vmatprep.mubr.bf16.mxu0 0
        %2314 = vmatmul.mubr.bf16.gmra.mrb[0].mxu0 %v2276
        %v2315 = vpop.f32.mrb[0].mxu0
        %v2316 = vadd.f32 %v2238, %v2315
        %v2317 = vpop.f32.mrb[0].mxu0
        %v2318 = vadd.f32 %v2238, %v2317
        %v2319 = vpop.f32.mrb[0].mxu0
        %v2320 = vadd.f32 %v2243, %v2319
        %v2321 = vpop.f32.mrb[0].mxu0
        %v2322 = vadd.f32 %v2243, %v2321
        %2323 = vmatprep.mubr.bf16.mxu0 0
        %2324 = vmatmul.mubr.bf16.gmra.mrb[0].mxu0 %v2279
        %v2325 = vpop.f32.mrb[0].mxu0
        %v2326 = vadd.f32 %v2248, %v2325
        %v2327 = vpop.f32.mrb[0].mxu0
        %v2328 = vadd.f32 %v2248, %v2327
        %v2329 = vpop.f32.mrb[0].mxu0
        %v2330 = vadd.f32 %v2253, %v2329
        %v2331 = vpop.f32.mrb[0].mxu0
        %v2332 = vadd.f32 %v2253, %v2331
        %2333 = vdwg.mxu0
        %v2334 = vadd.f32 %v2316, %v2193
        %v2335 = vadd.f32 %v2318, %v2221
        %v2336 = vadd.f32 %v2320, %v2194
        %v2337 = vadd.f32 %v2322, %v2222
        %v2338 = vadd.f32 %v2326, %v2195
        %v2339 = vadd.f32 %v2328, %v2223
        %v2340 = vadd.f32 %v2330, %v2196
        %v2341 = vadd.f32 %v2332, %v2224
        %2342 = vst [vmem:[%s405] sm:$0xff] %v2334
        %2343 = vst [vmem:[%s405 + $0x8] sm:$0xff] %v2335
        %2344 = vst [vmem:[%s405 + $0x10] sm:$0xff] %v2336
        %2345 = vst [vmem:[%s405 + $0x18] sm:$0xff] %v2337
        %2346 = vst [vmem:[%s405 + $0x20] sm:$0xff] %v2338
        %2347 = vst [vmem:[%s405 + $0x28] sm:$0xff] %v2339
        %2348 = vst [vmem:[%s405 + $0x30] sm:$0xff] %v2340
        %2349 = vst [vmem:[%s405 + $0x38] sm:$0xff] %v2341
        %s2350 = sand.u32 %s279, 1
        %s2351 = scalar_lea.sflag [#allocation3], %s2350
        %s2352 = sand.u32 %s279, 1
        %s2353 = smul.addr %s2352, 64
        %s2354 = scalar_lea.vmem [#allocation2], %s2353
        // Predicated region
        $region65: #{tpu_custom_call.1} parent=63 // pred_check
          %p2355 = pneg %p289
        $region66: #{tpu_custom_call.1} parent=63 // pred_check_branch
          %2357 = sbr.rel (%p2355) target = $region68
        $region67: #{tpu_custom_call.1} parent=63 // pred_region
          %s2359 = ssub.s32 1024, 1024
          %2360 = vsyncadd %s2351, %s2359
          %s2361 = smul.addr %s25, 8
          %s2362 = smul.addr %s2361, 128
          %s2363 = scalar_lea.hbm %s11, %s2362
          %s2364 = sshll.u32 %s2354, 4
          %s2365 = int_to_ptr.vmem [resolvable:$true] %s2364
          %2370 = dma.vmem_to_hbm [thread:$0]  %s2365, 1024, %s2363, %s2351, 256, 256, 16
        $region68: #{tpu_custom_call.1} parent=63 // pred_fallthru
          _
      $region64: #{tpu_custom_call.1} parent=5 // pred_fallthru
        _
      %p2371 = scmp.le.s32.totalorder 2, %s20
      // Predicated region
      $region69: #{tpu_custom_call.1} parent=5 // pred_check
        %p2372 = pneg %p2371
      $region70: #{tpu_custom_call.1} parent=5 // pred_check_branch
        %2374 = sbr.rel (%p2372) target = $region72
      $region71: #{tpu_custom_call.1} parent=5 // pred_region
        %s2375 = ssub.s32 %s20, 2
        // Predicated region
        $region73: #{tpu_custom_call.1} parent=71 // pred_check
          %p2376 = pneg %p295
        $region74: #{tpu_custom_call.1} parent=71 // pred_check_branch
          %2378 = sbr.rel (%p2376) target = $region76
        $region75: #{tpu_custom_call.1} parent=71 // pred_region
          %s2379 = sand.u32 %s280, 1
          %s2380 = scalar_lea.sflag [#allocation3], %s2379
          %s2381 = sand.u32 %s280, 1
          %s2382 = smul.addr %s2381, 64
          %s2383 = scalar_lea.vmem [#allocation2], %s2382
          %2384 = dma.done %s2380, 1024
        $region76: #{tpu_custom_call.1} parent=71 // pred_fallthru
          _
      $region72: #{tpu_custom_call.1} parent=5 // pred_fallthru
        _
    $region6: #{tpu_custom_call.1} parent=1 // loop_footer
      %s24 = sadd.s32 1, %s20
    $region7: #{tpu_custom_call.1} parent=1 // loop_footer_branch
      %19 = sbr.rel target = $region3
    $region8: #{tpu_custom_call.1} parent=1 // loop_exit
      _
    %2385 = vsyncpa [#allocation3], 1
    %s2386 = scalar_lea.sflag [#allocation3], 1
    %2387 = vsyncpa %s2386, 1

</llo_original>
